<compile_context>
chip_gen: v7x
topology: tpu7x:2x2x1
jax: 0.10.0
libtpu: 0.0.40
codegen_flags: <defaults>
</compile_context>

<pallas_src>
import jax
import jax.numpy as jnp
from jax.experimental import pallas as pl
from jax.experimental.pallas import tpu as pltpu

BINS = 16
OUT_DIM = 64


def color_hist_kernel(x_ref, w_ref, b_ref, o_ref, hist_ref):
    # x_ref:    (slab_rows, 128) pixel tile of one (batch, channel) pair
    # w_ref:    (3*BINS, OUT_DIM) f32 weights, pre-scaled by 1/P (VMEM resident)
    # b_ref:    (1, OUT_DIM) f32 bias
    # o_ref:    (1, OUT_DIM) f32 output block for this batch element
    # hist_ref: (3*BINS, 8, 128) f32 scratch: per-bin, per-(sublane, lane)
    #           partial counts; persists across the channel and slab grid axes.
    c = pl.program_id(1)   # channel (0..2)
    k = pl.program_id(2)   # pixel slab

    @pl.when((c == 0) & (k == 0))
    def _():
        hist_ref[...] = jnp.zeros_like(hist_ref)

    slab_rows = x_ref.shape[0]
    n_chunks = slab_rows // 8

    # Per-bin (8, 128) register accumulators for this grid step (pure VPU).
    accs = [jnp.zeros((8, 128), jnp.float32) for _ in range(BINS)]
    for j in range(n_chunks):
        xc = x_ref[j * 8:(j + 1) * 8, :].astype(jnp.float32)     # one vreg
        # floor(x*16) with exact power-of-two edges reproduces the PyTorch
        # range masks exactly; x == 1.0 -> bin 15; anything outside [0, 1]
        # (including the -1.0 padding sentinel) -> "bin" -1 (never counted).
        idx = jnp.minimum(jnp.floor(xc * float(BINS)), float(BINS - 1))
        idx = jnp.where((xc >= 0.0) & (xc <= 1.0), idx, -1.0)
        for i in range(BINS):
            accs[i] = accs[i] + (idx == float(i)).astype(jnp.float32)

    # Flush the register accumulators into the per-channel scratch rows.
    base = c * BINS
    for i in range(BINS):
        hist_ref[base + i] = hist_ref[base + i] + accs[i]

    @pl.when((c == 2) & (k == pl.num_programs(2) - 1))
    def _():
        h = hist_ref[...]                                  # (48, 8, 128)
        per_bin = jnp.sum(jnp.sum(h, axis=2), axis=1)      # (48,) exact counts
        feats = per_bin.reshape(1, 3 * BINS)               # (1, 48)
        logits = jnp.dot(feats, w_ref[...],
                         preferred_element_type=jnp.float32) + b_ref[...]
        # ReLU; Dropout(0.1) is identity in eval/inference mode.
        o_ref[...] = jnp.maximum(logits, 0.0)


def color_histogram_layer(x, w_t, bias):
    """x: (B, C>=3, H, W) float NCHW (only channels 0..2 are used, matching the
    PyTorch module).  w_t: (3*BINS, OUT_DIM) = transpose of the Linear(48, 64)
    weight.  bias: (OUT_DIM,).  Returns (B, OUT_DIM) f32."""
    B, C, H, W = x.shape
    assert C >= 3, "ColorHistogramLayer needs at least 3 channels"
    P = H * W

    x = x.astype(jnp.float32)
    x3 = x.reshape(B, C, P)                      # contiguous reshape, no copy

    # Pick a slab size (multiple of 8 rows of 128 pixels, capped at 128 rows
    # = 16K pixels / 64 KiB per block) that minimizes padding waste.
    rows = -(-P // 128)
    max_sr = min(128, -(-rows // 8) * 8)
    best_sr, best_waste = max_sr, (-rows) % max_sr
    for sr in range(max_sr, 7, -8):
        waste = (-rows) % sr
        if waste < best_waste:
            best_sr, best_waste = sr, waste
    slab_rows = best_sr
    n_slabs = -(-rows // slab_rows)
    rows_pad = n_slabs * slab_rows
    P_pad = rows_pad * 128

    if P_pad != P:
        # Sentinel -1.0 is outside [0, 1] -> dropped by the kernel's bin test.
        x3 = jnp.pad(x3, ((0, 0), (0, 0), (0, P_pad - P)), constant_values=-1.0)
    x4 = x3.reshape(B, C, rows_pad, 128)

    # Fold the 1/P histogram-mean normalization into the weights once
    # (true P, not the padded one).
    w_scaled = w_t.astype(jnp.float32) * (1.0 / P)
    bias2d = bias.reshape(1, OUT_DIM).astype(jnp.float32)

    grid = (B, 3, n_slabs)   # batch (parallel), channel, pixel slab

    out3 = pl.pallas_call(
        color_hist_kernel,
        out_shape=jax.ShapeDtypeStruct((B, 1, OUT_DIM), jnp.float32),
        grid_spec=pltpu.PrefetchScalarGridSpec(
            num_scalar_prefetch=0,
            grid=grid,
            in_specs=[
                pl.BlockSpec((None, None, slab_rows, 128),
                             lambda b, c, k: (b, c, k, 0)),
                pl.BlockSpec((3 * BINS, OUT_DIM), lambda b, c, k: (0, 0)),
                pl.BlockSpec((1, OUT_DIM), lambda b, c, k: (0, 0)),
            ],
            out_specs=pl.BlockSpec((None, 1, OUT_DIM), lambda b, c, k: (b, 0, 0)),
            scratch_shapes=[pltpu.VMEM((3 * BINS, 8, 128), jnp.float32)],
        ),
        compiler_params=pltpu.CompilerParams(
            dimension_semantics=("parallel", "arbitrary", "arbitrary")),
    )(x4, w_scaled, bias2d)

    return out3.reshape(B, OUT_DIM)


def _reference(x, w_t, bias):
    """Pure-JAX reference mirroring the PyTorch forward (eval mode)."""
    B = x.shape[0]
    P = x.shape[2] * x.shape[3]
    edges = jnp.linspace(0.0, 1.0, BINS + 1)

    def hist(xc):
        cols = []
        for i in range(BINS):
            m = (xc >= edges[i]) & (xc < edges[i + 1])
            if i == BINS - 1:
                m = m | (xc == edges[i + 1])
            cols.append(m.astype(jnp.float32).mean(axis=1, keepdims=True))
        return jnp.concatenate(cols, axis=1)

    feats = jnp.concatenate(
        [hist(x[:, c].reshape(B, P)) for c in range(3)], axis=1)
    return jax.nn.relu(feats @ w_t + bias[None, :])


if __name__ == "__main__":
    key = jax.random.PRNGKey(0)
    kx, kw, kb = jax.random.split(key, 3)

    # B=2, C=4 (RGBA; the extra channel is ignored, like the PyTorch module),
    # 16x16 images -> P=256, exercising the padded-slab path and both the
    # channel and slab reduction axes.
    x = jax.random.uniform(kx, (2, 4, 16, 16), dtype=jnp.float32)
    # Exercise the exact bin-edge / last-bin semantics.
    x = x.at[0, 0, 0, 0].set(1.0)
    x = x.at[0, 1, 0, 1].set(0.5)
    x = x.at[1, 2, 3, 3].set(0.0)

    # Deterministic synthetic parameters: w_t is (in_features=48, out=64),
    # i.e. the transpose of the PyTorch Linear weight.
    w_t = 0.05 * jax.random.normal(kw, (3 * BINS, OUT_DIM), dtype=jnp.float32)
    bias = 0.01 * jax.random.normal(kb, (OUT_DIM,), dtype=jnp.float32)

    out = color_histogram_layer(x, w_t, bias)
    out = jax.block_until_ready(out)

    ref = _reference(x, w_t, bias)
    assert out.shape == (2, OUT_DIM)
    assert jnp.allclose(out, ref, atol=1e-5, rtol=1e-5), float(
        jnp.max(jnp.abs(out - ref)))
    print("KERNEL_OK")
</pallas_src>

<mosaic_0001>
module attributes {stable_mosaic.version = 11 : i64} {
  func.func @color_hist_kernel(%arg0: i32, %arg1: i32, %arg2: i32, %arg3: memref<1x1x8x128xf32, #tpu.memory_space<vmem>>, %arg4: memref<48x64xf32, #tpu.memory_space<vmem>>, %arg5: memref<1x64xf32, #tpu.memory_space<vmem>>, %arg6: memref<1x1x64xf32, #tpu.memory_space<vmem>>, %arg7: memref<48x8x128xf32, #tpu.memory_space<vmem>>) attributes {dimension_semantics = [#tpu.dimension_semantics<parallel>, #tpu.dimension_semantics<arbitrary>, #tpu.dimension_semantics<arbitrary>], iteration_bounds = array<i64: 2, 3, 1>, scalar_prefetch = 0 : i64, scratch_operands = 1 : i64, tpu.core_type = #tpu.core_type<tc>, window_params = [{transform_indices = @transform_0, window_bounds = array<i64: 1, 1, 8, 128>}, {pipeline_mode = #tpu.pipeline_mode<synchronous>, transform_indices = @transform_1, window_bounds = array<i64: 48, 64>}, {pipeline_mode = #tpu.pipeline_mode<synchronous>, transform_indices = @transform_2, window_bounds = array<i64: 1, 64>}, {transform_indices = @transform_3, window_bounds = array<i64: 1, 1, 64>}]} {
    %c0_i32 = arith.constant 0 : i32
    %0 = arith.cmpi eq, %arg1, %c0_i32 : i32
    %c0_i32_0 = arith.constant 0 : i32
    %1 = arith.cmpi eq, %arg2, %c0_i32_0 : i32
    %2 = arith.andi %0, %1 : i1
    %3 = arith.extui %2 : i1 to i32
    %c0_i32_1 = arith.constant 0 : i32
    %4 = arith.cmpi ne, %3, %c0_i32_1 : i32
    scf.if %4 {
      %cst_125 = arith.constant 0.000000e+00 : f32
      %281 = vector.broadcast %cst_125 : f32 to vector<48x8x128xf32>
      %c0_126 = arith.constant 0 : index
      %c0_127 = arith.constant 0 : index
      %c0_128 = arith.constant 0 : index
      %282 = vector.load %arg7[%c0_126, %c0_127, %c0_128] : memref<48x8x128xf32, #tpu.memory_space<vmem>>, vector<48x8x128xf32>
      tpu.vector_store %arg7[%c0_126, %c0_127, %c0_128], %281 {strides = array<i32>} : memref<48x8x128xf32, #tpu.memory_space<vmem>>, vector<48x8x128xf32>,
    } else {
    }
    %cst = arith.constant 0.000000e+00 : f32
    %5 = vector.broadcast %cst : f32 to vector<8x128xf32>
    %cst_2 = arith.constant 0.000000e+00 : f32
    %6 = vector.broadcast %cst_2 : f32 to vector<8x128xf32>
    %cst_3 = arith.constant 0.000000e+00 : f32
    %7 = vector.broadcast %cst_3 : f32 to vector<8x128xf32>
    %cst_4 = arith.constant 0.000000e+00 : f32
    %8 = vector.broadcast %cst_4 : f32 to vector<8x128xf32>
    %cst_5 = arith.constant 0.000000e+00 : f32
    %9 = vector.broadcast %cst_5 : f32 to vector<8x128xf32>
    %cst_6 = arith.constant 0.000000e+00 : f32
    %10 = vector.broadcast %cst_6 : f32 to vector<8x128xf32>
    %cst_7 = arith.constant 0.000000e+00 : f32
    %11 = vector.broadcast %cst_7 : f32 to vector<8x128xf32>
    %cst_8 = arith.constant 0.000000e+00 : f32
    %12 = vector.broadcast %cst_8 : f32 to vector<8x128xf32>
    %cst_9 = arith.constant 0.000000e+00 : f32
    %13 = vector.broadcast %cst_9 : f32 to vector<8x128xf32>
    %cst_10 = arith.constant 0.000000e+00 : f32
    %14 = vector.broadcast %cst_10 : f32 to vector<8x128xf32>
    %cst_11 = arith.constant 0.000000e+00 : f32
    %15 = vector.broadcast %cst_11 : f32 to vector<8x128xf32>
    %cst_12 = arith.constant 0.000000e+00 : f32
    %16 = vector.broadcast %cst_12 : f32 to vector<8x128xf32>
    %cst_13 = arith.constant 0.000000e+00 : f32
    %17 = vector.broadcast %cst_13 : f32 to vector<8x128xf32>
    %cst_14 = arith.constant 0.000000e+00 : f32
    %18 = vector.broadcast %cst_14 : f32 to vector<8x128xf32>
    %cst_15 = arith.constant 0.000000e+00 : f32
    %19 = vector.broadcast %cst_15 : f32 to vector<8x128xf32>
    %cst_16 = arith.constant 0.000000e+00 : f32
    %20 = vector.broadcast %cst_16 : f32 to vector<8x128xf32>
    %c0 = arith.constant 0 : index
    %c0_17 = arith.constant 0 : index
    %c0_18 = arith.constant 0 : index
    %c0_19 = arith.constant 0 : index
    %21 = vector.load %arg3[%c0, %c0_17, %c0_18, %c0_19] : memref<1x1x8x128xf32, #tpu.memory_space<vmem>>, vector<1x1x8x128xf32>
    %22 = vector.shape_cast %21 : vector<1x1x8x128xf32> to vector<8x128xf32>
    %cst_20 = arith.constant 1.600000e+01 : f32
    %23 = vector.broadcast %cst_20 : f32 to vector<8x128xf32>
    %24 = arith.mulf %22, %23 : vector<8x128xf32>
    %25 = math.floor %24 : vector<8x128xf32>
    %cst_21 = arith.constant 1.500000e+01 : f32
    %26 = vector.broadcast %cst_21 : f32 to vector<8x128xf32>
    %27 = arith.minimumf %25, %26 : vector<8x128xf32>
    %cst_22 = arith.constant 0.000000e+00 : f32
    %28 = vector.broadcast %cst_22 : f32 to vector<8x128xf32>
    %29 = arith.cmpf oge, %22, %28 : vector<8x128xf32>
    %cst_23 = arith.constant 1.000000e+00 : f32
    %30 = vector.broadcast %cst_23 : f32 to vector<8x128xf32>
    %31 = arith.cmpf ole, %22, %30 : vector<8x128xf32>
    %32 = arith.andi %29, %31 : vector<8x128xi1>
    %cst_24 = arith.constant -1.000000e+00 : f32
    %33 = vector.broadcast %cst_24 : f32 to vector<8x128xf32>
    %34 = arith.select %32, %27, %33 : vector<8x128xi1>, vector<8x128xf32>
    %cst_25 = arith.constant 0.000000e+00 : f32
    %35 = vector.broadcast %cst_25 : f32 to vector<8x128xf32>
    %36 = arith.cmpf oeq, %34, %35 : vector<8x128xf32>
    %37 = arith.extui %36 : vector<8x128xi1> to vector<8x128xi32>
    %38 = arith.sitofp %37 : vector<8x128xi32> to vector<8x128xf32>
    %39 = arith.addf %5, %38 : vector<8x128xf32>
    %cst_26 = arith.constant 1.000000e+00 : f32
    %40 = vector.broadcast %cst_26 : f32 to vector<8x128xf32>
    %41 = arith.cmpf oeq, %34, %40 : vector<8x128xf32>
    %42 = arith.extui %41 : vector<8x128xi1> to vector<8x128xi32>
    %43 = arith.sitofp %42 : vector<8x128xi32> to vector<8x128xf32>
    %44 = arith.addf %6, %43 : vector<8x128xf32>
    %cst_27 = arith.constant 2.000000e+00 : f32
    %45 = vector.broadcast %cst_27 : f32 to vector<8x128xf32>
    %46 = arith.cmpf oeq, %34, %45 : vector<8x128xf32>
    %47 = arith.extui %46 : vector<8x128xi1> to vector<8x128xi32>
    %48 = arith.sitofp %47 : vector<8x128xi32> to vector<8x128xf32>
    %49 = arith.addf %7, %48 : vector<8x128xf32>
    %cst_28 = arith.constant 3.000000e+00 : f32
    %50 = vector.broadcast %cst_28 : f32 to vector<8x128xf32>
    %51 = arith.cmpf oeq, %34, %50 : vector<8x128xf32>
    %52 = arith.extui %51 : vector<8x128xi1> to vector<8x128xi32>
    %53 = arith.sitofp %52 : vector<8x128xi32> to vector<8x128xf32>
    %54 = arith.addf %8, %53 : vector<8x128xf32>
    %cst_29 = arith.constant 4.000000e+00 : f32
    %55 = vector.broadcast %cst_29 : f32 to vector<8x128xf32>
    %56 = arith.cmpf oeq, %34, %55 : vector<8x128xf32>
    %57 = arith.extui %56 : vector<8x128xi1> to vector<8x128xi32>
    %58 = arith.sitofp %57 : vector<8x128xi32> to vector<8x128xf32>
    %59 = arith.addf %9, %58 : vector<8x128xf32>
    %cst_30 = arith.constant 5.000000e+00 : f32
    %60 = vector.broadcast %cst_30 : f32 to vector<8x128xf32>
    %61 = arith.cmpf oeq, %34, %60 : vector<8x128xf32>
    %62 = arith.extui %61 : vector<8x128xi1> to vector<8x128xi32>
    %63 = arith.sitofp %62 : vector<8x128xi32> to vector<8x128xf32>
    %64 = arith.addf %10, %63 : vector<8x128xf32>
    %cst_31 = arith.constant 6.000000e+00 : f32
    %65 = vector.broadcast %cst_31 : f32 to vector<8x128xf32>
    %66 = arith.cmpf oeq, %34, %65 : vector<8x128xf32>
    %67 = arith.extui %66 : vector<8x128xi1> to vector<8x128xi32>
    %68 = arith.sitofp %67 : vector<8x128xi32> to vector<8x128xf32>
    %69 = arith.addf %11, %68 : vector<8x128xf32>
    %cst_32 = arith.constant 7.000000e+00 : f32
    %70 = vector.broadcast %cst_32 : f32 to vector<8x128xf32>
    %71 = arith.cmpf oeq, %34, %70 : vector<8x128xf32>
    %72 = arith.extui %71 : vector<8x128xi1> to vector<8x128xi32>
    %73 = arith.sitofp %72 : vector<8x128xi32> to vector<8x128xf32>
    %74 = arith.addf %12, %73 : vector<8x128xf32>
    %cst_33 = arith.constant 8.000000e+00 : f32
    %75 = vector.broadcast %cst_33 : f32 to vector<8x128xf32>
    %76 = arith.cmpf oeq, %34, %75 : vector<8x128xf32>
    %77 = arith.extui %76 : vector<8x128xi1> to vector<8x128xi32>
    %78 = arith.sitofp %77 : vector<8x128xi32> to vector<8x128xf32>
    %79 = arith.addf %13, %78 : vector<8x128xf32>
    %cst_34 = arith.constant 9.000000e+00 : f32
    %80 = vector.broadcast %cst_34 : f32 to vector<8x128xf32>
    %81 = arith.cmpf oeq, %34, %80 : vector<8x128xf32>
    %82 = arith.extui %81 : vector<8x128xi1> to vector<8x128xi32>
    %83 = arith.sitofp %82 : vector<8x128xi32> to vector<8x128xf32>
    %84 = arith.addf %14, %83 : vector<8x128xf32>
    %cst_35 = arith.constant 1.000000e+01 : f32
    %85 = vector.broadcast %cst_35 : f32 to vector<8x128xf32>
    %86 = arith.cmpf oeq, %34, %85 : vector<8x128xf32>
    %87 = arith.extui %86 : vector<8x128xi1> to vector<8x128xi32>
    %88 = arith.sitofp %87 : vector<8x128xi32> to vector<8x128xf32>
    %89 = arith.addf %15, %88 : vector<8x128xf32>
    %cst_36 = arith.constant 1.100000e+01 : f32
    %90 = vector.broadcast %cst_36 : f32 to vector<8x128xf32>
    %91 = arith.cmpf oeq, %34, %90 : vector<8x128xf32>
    %92 = arith.extui %91 : vector<8x128xi1> to vector<8x128xi32>
    %93 = arith.sitofp %92 : vector<8x128xi32> to vector<8x128xf32>
    %94 = arith.addf %16, %93 : vector<8x128xf32>
    %cst_37 = arith.constant 1.200000e+01 : f32
    %95 = vector.broadcast %cst_37 : f32 to vector<8x128xf32>
    %96 = arith.cmpf oeq, %34, %95 : vector<8x128xf32>
    %97 = arith.extui %96 : vector<8x128xi1> to vector<8x128xi32>
    %98 = arith.sitofp %97 : vector<8x128xi32> to vector<8x128xf32>
    %99 = arith.addf %17, %98 : vector<8x128xf32>
    %cst_38 = arith.constant 1.300000e+01 : f32
    %100 = vector.broadcast %cst_38 : f32 to vector<8x128xf32>
    %101 = arith.cmpf oeq, %34, %100 : vector<8x128xf32>
    %102 = arith.extui %101 : vector<8x128xi1> to vector<8x128xi32>
    %103 = arith.sitofp %102 : vector<8x128xi32> to vector<8x128xf32>
    %104 = arith.addf %18, %103 : vector<8x128xf32>
    %cst_39 = arith.constant 1.400000e+01 : f32
    %105 = vector.broadcast %cst_39 : f32 to vector<8x128xf32>
    %106 = arith.cmpf oeq, %34, %105 : vector<8x128xf32>
    %107 = arith.extui %106 : vector<8x128xi1> to vector<8x128xi32>
    %108 = arith.sitofp %107 : vector<8x128xi32> to vector<8x128xf32>
    %109 = arith.addf %19, %108 : vector<8x128xf32>
    %cst_40 = arith.constant 1.500000e+01 : f32
    %110 = vector.broadcast %cst_40 : f32 to vector<8x128xf32>
    %111 = arith.cmpf oeq, %34, %110 : vector<8x128xf32>
    %112 = arith.extui %111 : vector<8x128xi1> to vector<8x128xi32>
    %113 = arith.sitofp %112 : vector<8x128xi32> to vector<8x128xf32>
    %114 = arith.addf %20, %113 : vector<8x128xf32>
    %c16_i32 = arith.constant 16 : i32
    %115 = arith.muli %arg1, %c16_i32 : i32
    %c0_i32_41 = arith.constant 0 : i32
    %116 = arith.addi %115, %c0_i32_41 : i32
    %117 = arith.index_cast %116 : i32 to index
    %c0_42 = arith.constant 0 : index
    %c0_43 = arith.constant 0 : index
    %118 = vector.load %arg7[%117, %c0_42, %c0_43] : memref<48x8x128xf32, #tpu.memory_space<vmem>>, vector<1x8x128xf32>
    %119 = vector.shape_cast %118 : vector<1x8x128xf32> to vector<8x128xf32>
    %120 = arith.addf %119, %39 : vector<8x128xf32>
    %c0_i32_44 = arith.constant 0 : i32
    %121 = arith.addi %115, %c0_i32_44 : i32
    %122 = arith.index_cast %121 : i32 to index
    %c0_45 = arith.constant 0 : index
    %c0_46 = arith.constant 0 : index
    %123 = vector.load %arg7[%122, %c0_45, %c0_46] : memref<48x8x128xf32, #tpu.memory_space<vmem>>, vector<1x8x128xf32>
    %124 = vector.shape_cast %123 : vector<1x8x128xf32> to vector<8x128xf32>
    %125 = vector.shape_cast %120 : vector<8x128xf32> to vector<1x8x128xf32>
    tpu.vector_store %arg7[%122, %c0_45, %c0_46], %125 {strides = array<i32>} : memref<48x8x128xf32, #tpu.memory_space<vmem>>, vector<1x8x128xf32>,
    %c1_i32 = arith.constant 1 : i32
    %126 = arith.addi %115, %c1_i32 : i32
    %127 = arith.index_cast %126 : i32 to index
    %c0_47 = arith.constant 0 : index
    %c0_48 = arith.constant 0 : index
    %128 = vector.load %arg7[%127, %c0_47, %c0_48] : memref<48x8x128xf32, #tpu.memory_space<vmem>>, vector<1x8x128xf32>
    %129 = vector.shape_cast %128 : vector<1x8x128xf32> to vector<8x128xf32>
    %130 = arith.addf %129, %44 : vector<8x128xf32>
    %c1_i32_49 = arith.constant 1 : i32
    %131 = arith.addi %115, %c1_i32_49 : i32
    %132 = arith.index_cast %131 : i32 to index
    %c0_50 = arith.constant 0 : index
    %c0_51 = arith.constant 0 : index
    %133 = vector.load %arg7[%132, %c0_50, %c0_51] : memref<48x8x128xf32, #tpu.memory_space<vmem>>, vector<1x8x128xf32>
    %134 = vector.shape_cast %133 : vector<1x8x128xf32> to vector<8x128xf32>
    %135 = vector.shape_cast %130 : vector<8x128xf32> to vector<1x8x128xf32>
    tpu.vector_store %arg7[%132, %c0_50, %c0_51], %135 {strides = array<i32>} : memref<48x8x128xf32, #tpu.memory_space<vmem>>, vector<1x8x128xf32>,
    %c2_i32 = arith.constant 2 : i32
    %136 = arith.addi %115, %c2_i32 : i32
    %137 = arith.index_cast %136 : i32 to index
    %c0_52 = arith.constant 0 : index
    %c0_53 = arith.constant 0 : index
    %138 = vector.load %arg7[%137, %c0_52, %c0_53] : memref<48x8x128xf32, #tpu.memory_space<vmem>>, vector<1x8x128xf32>
    %139 = vector.shape_cast %138 : vector<1x8x128xf32> to vector<8x128xf32>
    %140 = arith.addf %139, %49 : vector<8x128xf32>
    %c2_i32_54 = arith.constant 2 : i32
    %141 = arith.addi %115, %c2_i32_54 : i32
    %142 = arith.index_cast %141 : i32 to index
    %c0_55 = arith.constant 0 : index
    %c0_56 = arith.constant 0 : index
    %143 = vector.load %arg7[%142, %c0_55, %c0_56] : memref<48x8x128xf32, #tpu.memory_space<vmem>>, vector<1x8x128xf32>
    %144 = vector.shape_cast %143 : vector<1x8x128xf32> to vector<8x128xf32>
    %145 = vector.shape_cast %140 : vector<8x128xf32> to vector<1x8x128xf32>
    tpu.vector_store %arg7[%142, %c0_55, %c0_56], %145 {strides = array<i32>} : memref<48x8x128xf32, #tpu.memory_space<vmem>>, vector<1x8x128xf32>,
    %c3_i32 = arith.constant 3 : i32
    %146 = arith.addi %115, %c3_i32 : i32
    %147 = arith.index_cast %146 : i32 to index
    %c0_57 = arith.constant 0 : index
    %c0_58 = arith.constant 0 : index
    %148 = vector.load %arg7[%147, %c0_57, %c0_58] : memref<48x8x128xf32, #tpu.memory_space<vmem>>, vector<1x8x128xf32>
    %149 = vector.shape_cast %148 : vector<1x8x128xf32> to vector<8x128xf32>
    %150 = arith.addf %149, %54 : vector<8x128xf32>
    %c3_i32_59 = arith.constant 3 : i32
    %151 = arith.addi %115, %c3_i32_59 : i32
    %152 = arith.index_cast %151 : i32 to index
    %c0_60 = arith.constant 0 : index
    %c0_61 = arith.constant 0 : index
    %153 = vector.load %arg7[%152, %c0_60, %c0_61] : memref<48x8x128xf32, #tpu.memory_space<vmem>>, vector<1x8x128xf32>
    %154 = vector.shape_cast %153 : vector<1x8x128xf32> to vector<8x128xf32>
    %155 = vector.shape_cast %150 : vector<8x128xf32> to vector<1x8x128xf32>
    tpu.vector_store %arg7[%152, %c0_60, %c0_61], %155 {strides = array<i32>} : memref<48x8x128xf32, #tpu.memory_space<vmem>>, vector<1x8x128xf32>,
    %c4_i32 = arith.constant 4 : i32
    %156 = arith.addi %115, %c4_i32 : i32
    %157 = arith.index_cast %156 : i32 to index
    %c0_62 = arith.constant 0 : index
    %c0_63 = arith.constant 0 : index
    %158 = vector.load %arg7[%157, %c0_62, %c0_63] : memref<48x8x128xf32, #tpu.memory_space<vmem>>, vector<1x8x128xf32>
    %159 = vector.shape_cast %158 : vector<1x8x128xf32> to vector<8x128xf32>
    %160 = arith.addf %159, %59 : vector<8x128xf32>
    %c4_i32_64 = arith.constant 4 : i32
    %161 = arith.addi %115, %c4_i32_64 : i32
    %162 = arith.index_cast %161 : i32 to index
    %c0_65 = arith.constant 0 : index
    %c0_66 = arith.constant 0 : index
    %163 = vector.load %arg7[%162, %c0_65, %c0_66] : memref<48x8x128xf32, #tpu.memory_space<vmem>>, vector<1x8x128xf32>
    %164 = vector.shape_cast %163 : vector<1x8x128xf32> to vector<8x128xf32>
    %165 = vector.shape_cast %160 : vector<8x128xf32> to vector<1x8x128xf32>
    tpu.vector_store %arg7[%162, %c0_65, %c0_66], %165 {strides = array<i32>} : memref<48x8x128xf32, #tpu.memory_space<vmem>>, vector<1x8x128xf32>,
    %c5_i32 = arith.constant 5 : i32
    %166 = arith.addi %115, %c5_i32 : i32
    %167 = arith.index_cast %166 : i32 to index
    %c0_67 = arith.constant 0 : index
    %c0_68 = arith.constant 0 : index
    %168 = vector.load %arg7[%167, %c0_67, %c0_68] : memref<48x8x128xf32, #tpu.memory_space<vmem>>, vector<1x8x128xf32>
    %169 = vector.shape_cast %168 : vector<1x8x128xf32> to vector<8x128xf32>
    %170 = arith.addf %169, %64 : vector<8x128xf32>
    %c5_i32_69 = arith.constant 5 : i32
    %171 = arith.addi %115, %c5_i32_69 : i32
    %172 = arith.index_cast %171 : i32 to index
    %c0_70 = arith.constant 0 : index
    %c0_71 = arith.constant 0 : index
    %173 = vector.load %arg7[%172, %c0_70, %c0_71] : memref<48x8x128xf32, #tpu.memory_space<vmem>>, vector<1x8x128xf32>
    %174 = vector.shape_cast %173 : vector<1x8x128xf32> to vector<8x128xf32>
    %175 = vector.shape_cast %170 : vector<8x128xf32> to vector<1x8x128xf32>
    tpu.vector_store %arg7[%172, %c0_70, %c0_71], %175 {strides = array<i32>} : memref<48x8x128xf32, #tpu.memory_space<vmem>>, vector<1x8x128xf32>,
    %c6_i32 = arith.constant 6 : i32
    %176 = arith.addi %115, %c6_i32 : i32
    %177 = arith.index_cast %176 : i32 to index
    %c0_72 = arith.constant 0 : index
    %c0_73 = arith.constant 0 : index
    %178 = vector.load %arg7[%177, %c0_72, %c0_73] : memref<48x8x128xf32, #tpu.memory_space<vmem>>, vector<1x8x128xf32>
    %179 = vector.shape_cast %178 : vector<1x8x128xf32> to vector<8x128xf32>
    %180 = arith.addf %179, %69 : vector<8x128xf32>
    %c6_i32_74 = arith.constant 6 : i32
    %181 = arith.addi %115, %c6_i32_74 : i32
    %182 = arith.index_cast %181 : i32 to index
    %c0_75 = arith.constant 0 : index
    %c0_76 = arith.constant 0 : index
    %183 = vector.load %arg7[%182, %c0_75, %c0_76] : memref<48x8x128xf32, #tpu.memory_space<vmem>>, vector<1x8x128xf32>
    %184 = vector.shape_cast %183 : vector<1x8x128xf32> to vector<8x128xf32>
    %185 = vector.shape_cast %180 : vector<8x128xf32> to vector<1x8x128xf32>
    tpu.vector_store %arg7[%182, %c0_75, %c0_76], %185 {strides = array<i32>} : memref<48x8x128xf32, #tpu.memory_space<vmem>>, vector<1x8x128xf32>,
    %c7_i32 = arith.constant 7 : i32
    %186 = arith.addi %115, %c7_i32 : i32
    %187 = arith.index_cast %186 : i32 to index
    %c0_77 = arith.constant 0 : index
    %c0_78 = arith.constant 0 : index
    %188 = vector.load %arg7[%187, %c0_77, %c0_78] : memref<48x8x128xf32, #tpu.memory_space<vmem>>, vector<1x8x128xf32>
    %189 = vector.shape_cast %188 : vector<1x8x128xf32> to vector<8x128xf32>
    %190 = arith.addf %189, %74 : vector<8x128xf32>
    %c7_i32_79 = arith.constant 7 : i32
    %191 = arith.addi %115, %c7_i32_79 : i32
    %192 = arith.index_cast %191 : i32 to index
    %c0_80 = arith.constant 0 : index
    %c0_81 = arith.constant 0 : index
    %193 = vector.load %arg7[%192, %c0_80, %c0_81] : memref<48x8x128xf32, #tpu.memory_space<vmem>>, vector<1x8x128xf32>
    %194 = vector.shape_cast %193 : vector<1x8x128xf32> to vector<8x128xf32>
    %195 = vector.shape_cast %190 : vector<8x128xf32> to vector<1x8x128xf32>
    tpu.vector_store %arg7[%192, %c0_80, %c0_81], %195 {strides = array<i32>} : memref<48x8x128xf32, #tpu.memory_space<vmem>>, vector<1x8x128xf32>,
    %c8_i32 = arith.constant 8 : i32
    %196 = arith.addi %115, %c8_i32 : i32
    %197 = arith.index_cast %196 : i32 to index
    %c0_82 = arith.constant 0 : index
    %c0_83 = arith.constant 0 : index
    %198 = vector.load %arg7[%197, %c0_82, %c0_83] : memref<48x8x128xf32, #tpu.memory_space<vmem>>, vector<1x8x128xf32>
    %199 = vector.shape_cast %198 : vector<1x8x128xf32> to vector<8x128xf32>
    %200 = arith.addf %199, %79 : vector<8x128xf32>
    %c8_i32_84 = arith.constant 8 : i32
    %201 = arith.addi %115, %c8_i32_84 : i32
    %202 = arith.index_cast %201 : i32 to index
    %c0_85 = arith.constant 0 : index
    %c0_86 = arith.constant 0 : index
    %203 = vector.load %arg7[%202, %c0_85, %c0_86] : memref<48x8x128xf32, #tpu.memory_space<vmem>>, vector<1x8x128xf32>
    %204 = vector.shape_cast %203 : vector<1x8x128xf32> to vector<8x128xf32>
    %205 = vector.shape_cast %200 : vector<8x128xf32> to vector<1x8x128xf32>
    tpu.vector_store %arg7[%202, %c0_85, %c0_86], %205 {strides = array<i32>} : memref<48x8x128xf32, #tpu.memory_space<vmem>>, vector<1x8x128xf32>,
    %c9_i32 = arith.constant 9 : i32
    %206 = arith.addi %115, %c9_i32 : i32
    %207 = arith.index_cast %206 : i32 to index
    %c0_87 = arith.constant 0 : index
    %c0_88 = arith.constant 0 : index
    %208 = vector.load %arg7[%207, %c0_87, %c0_88] : memref<48x8x128xf32, #tpu.memory_space<vmem>>, vector<1x8x128xf32>
    %209 = vector.shape_cast %208 : vector<1x8x128xf32> to vector<8x128xf32>
    %210 = arith.addf %209, %84 : vector<8x128xf32>
    %c9_i32_89 = arith.constant 9 : i32
    %211 = arith.addi %115, %c9_i32_89 : i32
    %212 = arith.index_cast %211 : i32 to index
    %c0_90 = arith.constant 0 : index
    %c0_91 = arith.constant 0 : index
    %213 = vector.load %arg7[%212, %c0_90, %c0_91] : memref<48x8x128xf32, #tpu.memory_space<vmem>>, vector<1x8x128xf32>
    %214 = vector.shape_cast %213 : vector<1x8x128xf32> to vector<8x128xf32>
    %215 = vector.shape_cast %210 : vector<8x128xf32> to vector<1x8x128xf32>
    tpu.vector_store %arg7[%212, %c0_90, %c0_91], %215 {strides = array<i32>} : memref<48x8x128xf32, #tpu.memory_space<vmem>>, vector<1x8x128xf32>,
    %c10_i32 = arith.constant 10 : i32
    %216 = arith.addi %115, %c10_i32 : i32
    %217 = arith.index_cast %216 : i32 to index
    %c0_92 = arith.constant 0 : index
    %c0_93 = arith.constant 0 : index
    %218 = vector.load %arg7[%217, %c0_92, %c0_93] : memref<48x8x128xf32, #tpu.memory_space<vmem>>, vector<1x8x128xf32>
    %219 = vector.shape_cast %218 : vector<1x8x128xf32> to vector<8x128xf32>
    %220 = arith.addf %219, %89 : vector<8x128xf32>
    %c10_i32_94 = arith.constant 10 : i32
    %221 = arith.addi %115, %c10_i32_94 : i32
    %222 = arith.index_cast %221 : i32 to index
    %c0_95 = arith.constant 0 : index
    %c0_96 = arith.constant 0 : index
    %223 = vector.load %arg7[%222, %c0_95, %c0_96] : memref<48x8x128xf32, #tpu.memory_space<vmem>>, vector<1x8x128xf32>
    %224 = vector.shape_cast %223 : vector<1x8x128xf32> to vector<8x128xf32>
    %225 = vector.shape_cast %220 : vector<8x128xf32> to vector<1x8x128xf32>
    tpu.vector_store %arg7[%222, %c0_95, %c0_96], %225 {strides = array<i32>} : memref<48x8x128xf32, #tpu.memory_space<vmem>>, vector<1x8x128xf32>,
    %c11_i32 = arith.constant 11 : i32
    %226 = arith.addi %115, %c11_i32 : i32
    %227 = arith.index_cast %226 : i32 to index
    %c0_97 = arith.constant 0 : index
    %c0_98 = arith.constant 0 : index
    %228 = vector.load %arg7[%227, %c0_97, %c0_98] : memref<48x8x128xf32, #tpu.memory_space<vmem>>, vector<1x8x128xf32>
    %229 = vector.shape_cast %228 : vector<1x8x128xf32> to vector<8x128xf32>
    %230 = arith.addf %229, %94 : vector<8x128xf32>
    %c11_i32_99 = arith.constant 11 : i32
    %231 = arith.addi %115, %c11_i32_99 : i32
    %232 = arith.index_cast %231 : i32 to index
    %c0_100 = arith.constant 0 : index
    %c0_101 = arith.constant 0 : index
    %233 = vector.load %arg7[%232, %c0_100, %c0_101] : memref<48x8x128xf32, #tpu.memory_space<vmem>>, vector<1x8x128xf32>
    %234 = vector.shape_cast %233 : vector<1x8x128xf32> to vector<8x128xf32>
    %235 = vector.shape_cast %230 : vector<8x128xf32> to vector<1x8x128xf32>
    tpu.vector_store %arg7[%232, %c0_100, %c0_101], %235 {strides = array<i32>} : memref<48x8x128xf32, #tpu.memory_space<vmem>>, vector<1x8x128xf32>,
    %c12_i32 = arith.constant 12 : i32
    %236 = arith.addi %115, %c12_i32 : i32
    %237 = arith.index_cast %236 : i32 to index
    %c0_102 = arith.constant 0 : index
    %c0_103 = arith.constant 0 : index
    %238 = vector.load %arg7[%237, %c0_102, %c0_103] : memref<48x8x128xf32, #tpu.memory_space<vmem>>, vector<1x8x128xf32>
    %239 = vector.shape_cast %238 : vector<1x8x128xf32> to vector<8x128xf32>
    %240 = arith.addf %239, %99 : vector<8x128xf32>
    %c12_i32_104 = arith.constant 12 : i32
    %241 = arith.addi %115, %c12_i32_104 : i32
    %242 = arith.index_cast %241 : i32 to index
    %c0_105 = arith.constant 0 : index
    %c0_106 = arith.constant 0 : index
    %243 = vector.load %arg7[%242, %c0_105, %c0_106] : memref<48x8x128xf32, #tpu.memory_space<vmem>>, vector<1x8x128xf32>
    %244 = vector.shape_cast %243 : vector<1x8x128xf32> to vector<8x128xf32>
    %245 = vector.shape_cast %240 : vector<8x128xf32> to vector<1x8x128xf32>
    tpu.vector_store %arg7[%242, %c0_105, %c0_106], %245 {strides = array<i32>} : memref<48x8x128xf32, #tpu.memory_space<vmem>>, vector<1x8x128xf32>,
    %c13_i32 = arith.constant 13 : i32
    %246 = arith.addi %115, %c13_i32 : i32
    %247 = arith.index_cast %246 : i32 to index
    %c0_107 = arith.constant 0 : index
    %c0_108 = arith.constant 0 : index
    %248 = vector.load %arg7[%247, %c0_107, %c0_108] : memref<48x8x128xf32, #tpu.memory_space<vmem>>, vector<1x8x128xf32>
    %249 = vector.shape_cast %248 : vector<1x8x128xf32> to vector<8x128xf32>
    %250 = arith.addf %249, %104 : vector<8x128xf32>
    %c13_i32_109 = arith.constant 13 : i32
    %251 = arith.addi %115, %c13_i32_109 : i32
    %252 = arith.index_cast %251 : i32 to index
    %c0_110 = arith.constant 0 : index
    %c0_111 = arith.constant 0 : index
    %253 = vector.load %arg7[%252, %c0_110, %c0_111] : memref<48x8x128xf32, #tpu.memory_space<vmem>>, vector<1x8x128xf32>
    %254 = vector.shape_cast %253 : vector<1x8x128xf32> to vector<8x128xf32>
    %255 = vector.shape_cast %250 : vector<8x128xf32> to vector<1x8x128xf32>
    tpu.vector_store %arg7[%252, %c0_110, %c0_111], %255 {strides = array<i32>} : memref<48x8x128xf32, #tpu.memory_space<vmem>>, vector<1x8x128xf32>,
    %c14_i32 = arith.constant 14 : i32
    %256 = arith.addi %115, %c14_i32 : i32
    %257 = arith.index_cast %256 : i32 to index
    %c0_112 = arith.constant 0 : index
    %c0_113 = arith.constant 0 : index
    %258 = vector.load %arg7[%257, %c0_112, %c0_113] : memref<48x8x128xf32, #tpu.memory_space<vmem>>, vector<1x8x128xf32>
    %259 = vector.shape_cast %258 : vector<1x8x128xf32> to vector<8x128xf32>
    %260 = arith.addf %259, %109 : vector<8x128xf32>
    %c14_i32_114 = arith.constant 14 : i32
    %261 = arith.addi %115, %c14_i32_114 : i32
    %262 = arith.index_cast %261 : i32 to index
    %c0_115 = arith.constant 0 : index
    %c0_116 = arith.constant 0 : index
    %263 = vector.load %arg7[%262, %c0_115, %c0_116] : memref<48x8x128xf32, #tpu.memory_space<vmem>>, vector<1x8x128xf32>
    %264 = vector.shape_cast %263 : vector<1x8x128xf32> to vector<8x128xf32>
    %265 = vector.shape_cast %260 : vector<8x128xf32> to vector<1x8x128xf32>
    tpu.vector_store %arg7[%262, %c0_115, %c0_116], %265 {strides = array<i32>} : memref<48x8x128xf32, #tpu.memory_space<vmem>>, vector<1x8x128xf32>,
    %c15_i32 = arith.constant 15 : i32
    %266 = arith.addi %115, %c15_i32 : i32
    %267 = arith.index_cast %266 : i32 to index
    %c0_117 = arith.constant 0 : index
    %c0_118 = arith.constant 0 : index
    %268 = vector.load %arg7[%267, %c0_117, %c0_118] : memref<48x8x128xf32, #tpu.memory_space<vmem>>, vector<1x8x128xf32>
    %269 = vector.shape_cast %268 : vector<1x8x128xf32> to vector<8x128xf32>
    %270 = arith.addf %269, %114 : vector<8x128xf32>
    %c15_i32_119 = arith.constant 15 : i32
    %271 = arith.addi %115, %c15_i32_119 : i32
    %272 = arith.index_cast %271 : i32 to index
    %c0_120 = arith.constant 0 : index
    %c0_121 = arith.constant 0 : index
    %273 = vector.load %arg7[%272, %c0_120, %c0_121] : memref<48x8x128xf32, #tpu.memory_space<vmem>>, vector<1x8x128xf32>
    %274 = vector.shape_cast %273 : vector<1x8x128xf32> to vector<8x128xf32>
    %275 = vector.shape_cast %270 : vector<8x128xf32> to vector<1x8x128xf32>
    tpu.vector_store %arg7[%272, %c0_120, %c0_121], %275 {strides = array<i32>} : memref<48x8x128xf32, #tpu.memory_space<vmem>>, vector<1x8x128xf32>,
    %c2_i32_122 = arith.constant 2 : i32
    %276 = arith.cmpi eq, %arg1, %c2_i32_122 : i32
    %c0_i32_123 = arith.constant 0 : i32
    %277 = arith.cmpi eq, %arg2, %c0_i32_123 : i32
    %278 = arith.andi %276, %277 : i1
    %279 = arith.extui %278 : i1 to i32
    %c0_i32_124 = arith.constant 0 : i32
    %280 = arith.cmpi ne, %279, %c0_i32_124 : i32
    scf.if %280 {
      %c0_125 = arith.constant 0 : index
      %c0_126 = arith.constant 0 : index
      %c0_127 = arith.constant 0 : index
      %281 = vector.load %arg7[%c0_125, %c0_126, %c0_127] : memref<48x8x128xf32, #tpu.memory_space<vmem>>, vector<48x8x128xf32>
      %cst_128 = arith.constant dense<0.000000e+00> : vector<48x8xf32>
      %282 = vector.multi_reduction <add>, %281, %cst_128 [2] : vector<48x8x128xf32> to vector<48x8xf32>
      %cst_129 = arith.constant dense<0.000000e+00> : vector<48xf32>
      %283 = vector.multi_reduction <add>, %282, %cst_129 [1] : vector<48x8xf32> to vector<48xf32>
      %284 = vector.shape_cast %283 : vector<48xf32> to vector<1x48xf32>
      %c0_130 = arith.constant 0 : index
      %c0_131 = arith.constant 0 : index
      %285 = vector.load %arg4[%c0_130, %c0_131] : memref<48x64xf32, #tpu.memory_space<vmem>>, vector<48x64xf32>
      %cst_132 = arith.constant dense<0.000000e+00> : vector<1x64xf32>
      %286 = tpu.matmul %284, %285, %cst_132 {dimension_numbers = #tpu.dot_dimension_numbers<[1], [0], [0], [1], [0, 0, 1, 1], [], []>} : vector<1x48xf32>, vector<48x64xf32>, vector<1x64xf32> -> vector<1x64xf32>
      %c0_133 = arith.constant 0 : index
      %c0_134 = arith.constant 0 : index
      %287 = vector.load %arg5[%c0_133, %c0_134] : memref<1x64xf32, #tpu.memory_space<vmem>>, vector<1x64xf32>
      %288 = arith.addf %286, %287 : vector<1x64xf32>
      %cst_135 = arith.constant 0.000000e+00 : f32
      %289 = vector.broadcast %cst_135 : f32 to vector<1x64xf32>
      %290 = arith.maximumf %288, %289 : vector<1x64xf32>
      %c0_136 = arith.constant 0 : index
      %c0_137 = arith.constant 0 : index
      %c0_138 = arith.constant 0 : index
      %291 = vector.load %arg6[%c0_136, %c0_137, %c0_138] : memref<1x1x64xf32, #tpu.memory_space<vmem>>, vector<1x1x64xf32>
      %292 = vector.shape_cast %291 : vector<1x1x64xf32> to vector<1x64xf32>
      %293 = vector.shape_cast %290 : vector<1x64xf32> to vector<1x1x64xf32>
      tpu.vector_store %arg6[%c0_136, %c0_137, %c0_138], %293 {strides = array<i32>} : memref<1x1x64xf32, #tpu.memory_space<vmem>>, vector<1x1x64xf32>,
    } else {
    }
    return
  }
  func.func @transform_0(%arg0: i32, %arg1: i32, %arg2: i32) -> (i32, i32, i32, i32) {
    %c0_i32 = arith.constant 0 : i32
    %c0_i32_0 = arith.constant 0 : i32
    return %arg0, %arg1, %arg2, %c0_i32 : i32, i32, i32, i32
  }
  func.func @transform_1(%arg0: i32, %arg1: i32, %arg2: i32) -> (i32, i32) {
    %c0_i32 = arith.constant 0 : i32
    %c0_i32_0 = arith.constant 0 : i32
    %c0_i32_1 = arith.constant 0 : i32
    return %c0_i32, %c0_i32_0 : i32, i32
  }
  func.func @transform_2(%arg0: i32, %arg1: i32, %arg2: i32) -> (i32, i32) {
    %c0_i32 = arith.constant 0 : i32
    %c0_i32_0 = arith.constant 0 : i32
    %c0_i32_1 = arith.constant 0 : i32
    return %c0_i32, %c0_i32_0 : i32, i32
  }
  func.func @transform_3(%arg0: i32, %arg1: i32, %arg2: i32) -> (i32, i32, i32) {
    %c0_i32 = arith.constant 0 : i32
    %c0_i32_0 = arith.constant 0 : i32
    %c0_i32_1 = arith.constant 0 : i32
    return %arg0, %c0_i32, %c0_i32_0 : i32, i32, i32
  }
}

</mosaic_0001>

<llo_original>
// kernel: tpu_custom_call.1
$region0: #{tpu_custom_call.1}
  #allocation0 [shape = 'u32[]', space=smem, size = 0x4, offset = 0x4, fixed_abs, tag = 'smem constant byte address 0x4 - core index']
  #allocation1 [shape = 'u32[144,128]{1,0:T(1,128)}', space=vmem, size = 0x12000, scoped, tag = 'internal scratch']
  #allocation2 [shape = 'f32[48,8,128]{2,1,0:T(8,128)}', space=vmem, size = 0x30000, scoped, tag = 'scratch operand']
  %s0 = inlined_call_operand.hbm [shape: f32[2,4,8,128], index: 0, kind: input, shape index: {}]
  %s1 = inlined_call_operand.hbm [shape: f32[48,64], index: 1, kind: input, shape index: {}]
  %s2 = inlined_call_operand.vmem [shape: f32[1,64], index: 2, kind: input, shape index: {}]
  %s3 = inlined_call_operand.hbm [shape: f32[2,1,64], index: 3, kind: output, shape index: {}]
  %s4 = sld [smem:[#allocation0]]
  $region61: #{tpu_custom_call.1} parent=0
    _
  %s6 = ssub.s32 1, %s4
  %s7 = scalar_select 0, %s6, %s4
  $region1: #{tpu_custom_call.1} parent=0
    #allocation3 [shape = 'u8[8192]{0}', space=vmem, size = 0x2000, scoped, tag = 'input window, operand 0']
    #allocation4 [shape = 's32[2]{0}', space=sflag, size = 0x8, scoped, tag = 'scoped memory for tpu_custom_call.1']
    #allocation5 [shape = 's32[2]{0}', space=sflag, size = 0x8, scoped, tag = 'scoped memory for tpu_custom_call.1']
    #allocation6 [shape = 'u8[24576]{0}', space=vmem, size = 0x6000, scoped, tag = 'input window, operand 1, single buffered']
    #allocation7 [shape = 's32[1]{0}', space=sflag, size = 0x4, scoped, tag = 'scoped memory for tpu_custom_call.1']
    #allocation8 [shape = 'u8[1024]{0}', space=vmem, size = 0x400, scoped, tag = 'output window, operand 0']
    %8 = vsyncpa [#allocation4], 0
    %s9 = scalar_lea.sflag [#allocation4], 1
    %10 = vsyncpa %s9, 0
    %11 = vsyncpa [#allocation7], 0
    %12 = vsyncpa [#allocation5], 0
    %s13 = scalar_lea.sflag [#allocation5], 1
    %14 = vsyncpa %s13, 0
    loop: start=0, step=1, limit=8
    $region2: #{tpu_custom_call.1} parent=1 // loop_pre_header
      _
    $region3: #{tpu_custom_call.1} parent=1 // loop_header
      %s16 = sphi 0, %s20
      %p17 = scmp.ge.s32.totalorder %s16, 8
      %s23 = sphi 0, %s42
      %s24 = sphi 0, %s38
      %s25 = sphi 0, %s34
      %s26 = sphi 0, %s23
      %s27 = sphi 0, %s24
      %s28 = sphi 0, %s25
      %s29 = sphi 0, %s26
      %s30 = sphi 0, %s27
      %s31 = sphi 0, %s28
      %s49 = sphi 0, %s51
      %s52 = sphi 0, %s49
      %s53 = sphi 0, %s52
      %s69 = sphi 0, %s53
      %s73 = sphi 0, %s73
      %s75 = sphi 0, %s73
      %s76 = sphi 0, %s75
      %s90 = sphi 0, %s76
      %s94 = sphi 0, %s94
      %s96 = sphi 0, %s94
      %s97 = sphi 0, %s96
      %s111 = sphi 0, %s97
      %s117 = sphi 0, %s119
      %s120 = sphi 0, %s117
      %s121 = sphi 0, %s120
      %s137 = sphi 0, %s121
    $region4: #{tpu_custom_call.1} parent=1 // loop_header_branch
      %19 = sbr.rel (%p17) target = $region8
    $region5: #{tpu_custom_call.1} parent=1 // loop_body
      %s21 = ssub.s32 %s16, 1
      %s22 = ssub.s32 %s16, 2
      %s32 = sadd.s32 1, %s25
      %p33 = scmp.ge.s32.totalorder %s32, 1
      %s34 = scalar_select %p33, 0, %s32
      %s35 = sadd.s32 1, %s24
      %s36 = scalar_select %p33, %s35, %s24
      %p37 = scmp.ge.s32.totalorder %s36, 3
      %s38 = scalar_select %p37, 0, %s36
      %s39 = sadd.s32 1, %s23
      %s40 = scalar_select %p37, %s39, %s23
      %p41 = scmp.ge.s32.totalorder %s40, 2
      %s42 = scalar_select %p41, 0, %s40
      %s43 = ssub.s32 %s23, %s42
      %s44 = ssub.s32 %s24, %s38
      %s45 = sor.u32 %s43, %s44
      %s46 = ssub.s32 %s25, %s34
      %s47 = sor.u32 %s45, %s46
      %p48 = scmp.eq.s32.totalorder %s47, 0
      %s50 = sadd.s32 %s49, 1
      %s51 = scalar_select %p48, %s49, %s50
      %p54 = pneg %p48
      %p55 = scmp.eq.s32.totalorder %s16, 5
      %p56 = por %p54, %p55
      %p57 = scmp.ne.s32.totalorder %s49, %s52
      %p58 = scmp.eq.s32.totalorder %s16, 0
      %p59 = por %p57, %p58
      %p60 = scmp.ne.s32.totalorder %s49, %s52
      %p61 = scmp.eq.s32.totalorder %s21, 5
      %p62 = por %p60, %p61
      %p63 = scmp.ne.s32.totalorder %s52, %s53
      %p64 = scmp.eq.s32.totalorder %s21, 0
      %p65 = por %p63, %p64
      %p66 = scmp.ne.s32.totalorder %s52, %s53
      %p67 = scmp.eq.s32.totalorder %s22, 5
      %p68 = por %p66, %p67
      %p70 = scmp.ne.s32.totalorder %s53, %s69
      %p71 = scmp.eq.s32.totalorder %s22, 0
      %p72 = por %p70, %p71
      %s74 = sadd.s32 %s73, 1
      %p77 = scmp.eq.s32.totalorder %s16, 5
      %p78 = scmp.ne.s32.totalorder %s73, %s75
      %p79 = scmp.eq.s32.totalorder %s16, 0
      %p80 = por %p78, %p79
      %p81 = scmp.ne.s32.totalorder %s73, %s75
      %p82 = scmp.eq.s32.totalorder %s21, 5
      %p83 = por %p81, %p82
      %p84 = scmp.ne.s32.totalorder %s75, %s76
      %p85 = scmp.eq.s32.totalorder %s21, 0
      %p86 = por %p84, %p85
      %p87 = scmp.ne.s32.totalorder %s75, %s76
      %p88 = scmp.eq.s32.totalorder %s22, 5
      %p89 = por %p87, %p88
      %p91 = scmp.ne.s32.totalorder %s76, %s90
      %p92 = scmp.eq.s32.totalorder %s22, 0
      %p93 = por %p91, %p92
      %s95 = sadd.s32 %s94, 1
      %p98 = scmp.eq.s32.totalorder %s16, 5
      %p99 = scmp.ne.s32.totalorder %s94, %s96
      %p100 = scmp.eq.s32.totalorder %s16, 0
      %p101 = por %p99, %p100
      %p102 = scmp.ne.s32.totalorder %s94, %s96
      %p103 = scmp.eq.s32.totalorder %s21, 5
      %p104 = por %p102, %p103
      %p105 = scmp.ne.s32.totalorder %s96, %s97
      %p106 = scmp.eq.s32.totalorder %s21, 0
      %p107 = por %p105, %p106
      %p108 = scmp.ne.s32.totalorder %s96, %s97
      %p109 = scmp.eq.s32.totalorder %s22, 5
      %p110 = por %p108, %p109
      %p112 = scmp.ne.s32.totalorder %s97, %s111
      %p113 = scmp.eq.s32.totalorder %s22, 0
      %p114 = por %p112, %p113
      %s115 = ssub.s32 %s23, %s42
      %p116 = scmp.eq.s32.totalorder %s115, 0
      %s118 = sadd.s32 %s117, 1
      %s119 = scalar_select %p116, %s117, %s118
      %p122 = pneg %p116
      %p123 = scmp.eq.s32.totalorder %s16, 5
      %p124 = por %p122, %p123
      %p125 = scmp.ne.s32.totalorder %s117, %s120
      %p126 = scmp.eq.s32.totalorder %s16, 0
      %p127 = por %p125, %p126
      %p128 = scmp.ne.s32.totalorder %s117, %s120
      %p129 = scmp.eq.s32.totalorder %s21, 5
      %p130 = por %p128, %p129
      %p131 = scmp.ne.s32.totalorder %s120, %s121
      %p132 = scmp.eq.s32.totalorder %s21, 0
      %p133 = por %p131, %p132
      %p134 = scmp.ne.s32.totalorder %s120, %s121
      %p135 = scmp.eq.s32.totalorder %s22, 5
      %p136 = por %p134, %p135
      %p138 = scmp.ne.s32.totalorder %s121, %s137
      %p139 = scmp.eq.s32.totalorder %s22, 0
      %p140 = por %p138, %p139
      %p141 = scmp.le.s32.totalorder 1, %s16
      %p142 = scmp.lt.s32.totalorder %s16, 7
      %p143 = pnand %p141, %p142
      %p144 = pneg %p143
      // Predicated region
      $region9: #{tpu_custom_call.1} parent=5 // pred_check
        _
      $region10: #{tpu_custom_call.1} parent=5 // pred_check_branch
        %146 = sbr.rel (%p143) target = $region12
      $region11: #{tpu_custom_call.1} parent=5 // pred_region
        %s147 = ssub.s32 %s16, 1
        // Predicated region
        $region13: #{tpu_custom_call.1} parent=11 // pred_check
          %p148 = pneg %p86
        $region14: #{tpu_custom_call.1} parent=11 // pred_check_branch
          %150 = sbr.rel (%p148) target = $region16
        $region15: #{tpu_custom_call.1} parent=11 // pred_region
          %s152 = ssub.s32 768, 768
          %153 = vsyncadd [#allocation7], %s152
          %s154 = sshll.u32 [#allocation6], 4
          %s155 = int_to_ptr.vmem [resolvable:$true] %s154
          %160 = dma.hbm_to_vmem [thread:$0]  %s1, 768, %s155, [#allocation7], 128, 128, 8
        $region16: #{tpu_custom_call.1} parent=11 // pred_fallthru
          _
        // Predicated region
        $region17: #{tpu_custom_call.1} parent=11 // pred_check
          %p161 = pneg %p107
        $region18: #{tpu_custom_call.1} parent=11 // pred_check_branch
          %163 = sbr.rel (%p161) target = $region20
        $region19: #{tpu_custom_call.1} parent=11 // pred_region
          _
        $region20: #{tpu_custom_call.1} parent=11 // pred_fallthru
          _
      $region12: #{tpu_custom_call.1} parent=5 // pred_fallthru
        _
      %p164 = scmp.lt.s32.totalorder %s16, 6
      // Predicated region
      $region21: #{tpu_custom_call.1} parent=5 // pred_check
        %p165 = pneg %p164
      $region22: #{tpu_custom_call.1} parent=5 // pred_check_branch
        %167 = sbr.rel (%p165) target = $region24
      $region23: #{tpu_custom_call.1} parent=5 // pred_region
        // Predicated region
        $region25: #{tpu_custom_call.1} parent=23 // pred_check
          %p168 = pneg %p59
        $region26: #{tpu_custom_call.1} parent=23 // pred_check_branch
          %170 = sbr.rel (%p168) target = $region28
        $region27: #{tpu_custom_call.1} parent=23 // pred_region
          %s171 = sand.u32 %s49, 1
          %s172 = scalar_lea.sflag [#allocation4], %s171
          %s173 = sand.u32 %s49, 1
          %s174 = smul.addr %s173, 8
          %s175 = scalar_lea.vmem [#allocation3], %s174
          %s177 = ssub.s32 128, 128
          %178 = vsyncadd %s172, %s177
          %s179 = sadd.s32 %s25, %s24
          %s180 = smul.addr %s23, 4
          %s181 = sadd.s32 %s179, %s180
          %s182 = smul.addr %s181, 128
          %s183 = scalar_lea.hbm %s0, %s182
          %s185 = sshll.u32 %s175, 4
          %s186 = int_to_ptr.vmem [resolvable:$true] %s185
          %188 = dma.hbm_to_vmem [thread:$0]  %s183, 128, %s186, %s172
        $region28: #{tpu_custom_call.1} parent=23 // pred_fallthru
          _
      $region24: #{tpu_custom_call.1} parent=5 // pred_fallthru
        _
      %p189 = scmp.le.s32.totalorder 1, %s16
      %p190 = scmp.lt.s32.totalorder %s16, 7
      %p191 = pnand %p189, %p190
      %p192 = pneg %p191
      // Predicated region
      $region29: #{tpu_custom_call.1} parent=5 // pred_check
        _
      $region30: #{tpu_custom_call.1} parent=5 // pred_check_branch
        %194 = sbr.rel (%p191) target = $region32
      $region31: #{tpu_custom_call.1} parent=5 // pred_region
        %s195 = ssub.s32 %s16, 1
        %s196 = sand.u32 %s52, 1
        %s197 = scalar_lea.sflag [#allocation4], %s196
        %s198 = sand.u32 %s52, 1
        %s199 = smul.addr %s198, 8
        %s200 = scalar_lea.vmem [#allocation3], %s199
        // Predicated region
        $region33: #{tpu_custom_call.1} parent=31 // pred_check
          %p201 = pneg %p65
        $region34: #{tpu_custom_call.1} parent=31 // pred_check_branch
          %203 = sbr.rel (%p201) target = $region36
        $region35: #{tpu_custom_call.1} parent=31 // pred_region
          %204 = dma.done %s197, 128
        $region36: #{tpu_custom_call.1} parent=31 // pred_fallthru
          _
        // Predicated region
        $region37: #{tpu_custom_call.1} parent=31 // pred_check
          %p205 = pneg %p86
        $region38: #{tpu_custom_call.1} parent=31 // pred_check_branch
          %207 = sbr.rel (%p205) target = $region40
        $region39: #{tpu_custom_call.1} parent=31 // pred_region
          %208 = dma.done [#allocation7], 768
        $region40: #{tpu_custom_call.1} parent=31 // pred_fallthru
          _
        %s209 = sand.u32 %s52, 1
        %s210 = scalar_lea.sflag [#allocation4], %s209
        %s211 = sand.u32 %s52, 1
        %s212 = smul.addr %s211, 8
        %s213 = scalar_lea.vmem [#allocation3], %s212
        %p214 = pneg %p65
        %p215 = pneg %p62
        %p216 = pneg %p86
        %p217 = pneg %p83
        %p218 = pneg %p107
        %p219 = pneg %p104
        %p220 = pneg %p133
        %p221 = pneg %p130
        %s222 = sand.u32 %s120, 1
        %s223 = scalar_lea.sflag [#allocation5], %s222
        %s224 = sand.u32 %s120, 1
        %s225 = scalar_lea.vmem [#allocation8], %s224
        %p226 = scmp.eq.s32.totalorder %s27, 0
        %p227 = scmp.eq.s32.totalorder %s28, 0
        %p228 = pnand %p226, %p227
        %p229 = pneg %p228
        // Predicated region
        $region41: #{tpu_custom_call.1} parent=31 // pred_check
          _
        $region42: #{tpu_custom_call.1} parent=31 // pred_check_branch
          %231 = sbr.rel (%p228) target = $region44
        $region43: #{tpu_custom_call.1} parent=31 // pred_region
          %232 = vst [vmem:[#allocation2] sm:$0xff] 0.0
          %233 = vst [vmem:[#allocation2 + $0x8] sm:$0xff] 0.0
          %234 = vst [vmem:[#allocation2 + $0x10] sm:$0xff] 0.0
          %235 = vst [vmem:[#allocation2 + $0x18] sm:$0xff] 0.0
          %236 = vst [vmem:[#allocation2 + $0x20] sm:$0xff] 0.0
          %237 = vst [vmem:[#allocation2 + $0x28] sm:$0xff] 0.0
          %238 = vst [vmem:[#allocation2 + $0x30] sm:$0xff] 0.0
          %239 = vst [vmem:[#allocation2 + $0x38] sm:$0xff] 0.0
          %240 = vst [vmem:[#allocation2 + $0x40] sm:$0xff] 0.0
          %241 = vst [vmem:[#allocation2 + $0x48] sm:$0xff] 0.0
          %242 = vst [vmem:[#allocation2 + $0x50] sm:$0xff] 0.0
          %243 = vst [vmem:[#allocation2 + $0x58] sm:$0xff] 0.0
          %244 = vst [vmem:[#allocation2 + $0x60] sm:$0xff] 0.0
          %245 = vst [vmem:[#allocation2 + $0x68] sm:$0xff] 0.0
          %246 = vst [vmem:[#allocation2 + $0x70] sm:$0xff] 0.0
          %247 = vst [vmem:[#allocation2 + $0x78] sm:$0xff] 0.0
          %248 = vst [vmem:[#allocation2 + $0x80] sm:$0xff] 0.0
          %249 = vst [vmem:[#allocation2 + $0x88] sm:$0xff] 0.0
          %250 = vst [vmem:[#allocation2 + $0x90] sm:$0xff] 0.0
          %251 = vst [vmem:[#allocation2 + $0x98] sm:$0xff] 0.0
          %252 = vst [vmem:[#allocation2 + $0xa0] sm:$0xff] 0.0
          %253 = vst [vmem:[#allocation2 + $0xa8] sm:$0xff] 0.0
          %254 = vst [vmem:[#allocation2 + $0xb0] sm:$0xff] 0.0
          %255 = vst [vmem:[#allocation2 + $0xb8] sm:$0xff] 0.0
          %256 = vst [vmem:[#allocation2 + $0xc0] sm:$0xff] 0.0
          %257 = vst [vmem:[#allocation2 + $0xc8] sm:$0xff] 0.0
          %258 = vst [vmem:[#allocation2 + $0xd0] sm:$0xff] 0.0
          %259 = vst [vmem:[#allocation2 + $0xd8] sm:$0xff] 0.0
          %260 = vst [vmem:[#allocation2 + $0xe0] sm:$0xff] 0.0
          %261 = vst [vmem:[#allocation2 + $0xe8] sm:$0xff] 0.0
          %262 = vst [vmem:[#allocation2 + $0xf0] sm:$0xff] 0.0
          %263 = vst [vmem:[#allocation2 + $0xf8] sm:$0xff] 0.0
          %264 = vst [vmem:[#allocation2 + $0x100] sm:$0xff] 0.0
          %265 = vst [vmem:[#allocation2 + $0x108] sm:$0xff] 0.0
          %266 = vst [vmem:[#allocation2 + $0x110] sm:$0xff] 0.0
          %267 = vst [vmem:[#allocation2 + $0x118] sm:$0xff] 0.0
          %268 = vst [vmem:[#allocation2 + $0x120] sm:$0xff] 0.0
          %269 = vst [vmem:[#allocation2 + $0x128] sm:$0xff] 0.0
          %270 = vst [vmem:[#allocation2 + $0x130] sm:$0xff] 0.0
          %271 = vst [vmem:[#allocation2 + $0x138] sm:$0xff] 0.0
          %272 = vst [vmem:[#allocation2 + $0x140] sm:$0xff] 0.0
          %273 = vst [vmem:[#allocation2 + $0x148] sm:$0xff] 0.0
          %274 = vst [vmem:[#allocation2 + $0x150] sm:$0xff] 0.0
          %275 = vst [vmem:[#allocation2 + $0x158] sm:$0xff] 0.0
          %276 = vst [vmem:[#allocation2 + $0x160] sm:$0xff] 0.0
          %277 = vst [vmem:[#allocation2 + $0x168] sm:$0xff] 0.0
          %278 = vst [vmem:[#allocation2 + $0x170] sm:$0xff] 0.0
          %279 = vst [vmem:[#allocation2 + $0x178] sm:$0xff] 0.0
        $region44: #{tpu_custom_call.1} parent=31 // pred_fallthru
          _
        %v280 = vld [vmem:[%s200] sm:$0xff]
        %v281 = vmul.f32 %v280, 16.0
        %v282 = vfloor.f32 %v281
        %v283 = vmin.f32 %v282, 15.0
        %vm284 = vcmp.ge.f32.partialorder %v280, 0.0
        %vm285 = vcmp.le.f32.partialorder %v280, 1.0
        %vm286 = vmand %vm284, %vm285
        %v287 = vsel %vm286, %v283, -1.0
        %vm288 = vcmp.eq.f32.partialorder %v287, 0.0
        %v289 = vsel %vm288, 1, 0
        %v290 = vcvt.s32.f32 %v289
        %v291 = vadd.f32 %v290, 0.0
        %vm292 = vcmp.eq.f32.partialorder %v287, 1.0
        %v293 = vsel %vm292, 1, 0
        %v294 = vcvt.s32.f32 %v293
        %v295 = vadd.f32 %v294, 0.0
        %vm296 = vcmp.eq.f32.partialorder %v287, 2.0
        %v297 = vsel %vm296, 1, 0
        %v298 = vcvt.s32.f32 %v297
        %v299 = vadd.f32 %v298, 0.0
        %vm300 = vcmp.eq.f32.partialorder %v287, 3.0
        %v301 = vsel %vm300, 1, 0
        %v302 = vcvt.s32.f32 %v301
        %v303 = vadd.f32 %v302, 0.0
        %vm304 = vcmp.eq.f32.partialorder %v287, 4.0
        %v305 = vsel %vm304, 1, 0
        %v306 = vcvt.s32.f32 %v305
        %v307 = vadd.f32 %v306, 0.0
        %vm308 = vcmp.eq.f32.partialorder %v287, 5.0
        %v309 = vsel %vm308, 1, 0
        %v310 = vcvt.s32.f32 %v309
        %v311 = vadd.f32 %v310, 0.0
        %vm312 = vcmp.eq.f32.partialorder %v287, 6.0
        %v313 = vsel %vm312, 1, 0
        %v314 = vcvt.s32.f32 %v313
        %v315 = vadd.f32 %v314, 0.0
        %vm316 = vcmp.eq.f32.partialorder %v287, 7.0
        %v317 = vsel %vm316, 1, 0
        %v318 = vcvt.s32.f32 %v317
        %v319 = vadd.f32 %v318, 0.0
        %vm320 = vcmp.eq.f32.partialorder %v287, 8.0
        %v321 = vsel %vm320, 1, 0
        %v322 = vcvt.s32.f32 %v321
        %v323 = vadd.f32 %v322, 0.0
        %vm324 = vcmp.eq.f32.partialorder %v287, 9.0
        %v325 = vsel %vm324, 1, 0
        %v326 = vcvt.s32.f32 %v325
        %v327 = vadd.f32 %v326, 0.0
        %vm328 = vcmp.eq.f32.partialorder %v287, 10.0
        %v329 = vsel %vm328, 1, 0
        %v330 = vcvt.s32.f32 %v329
        %v331 = vadd.f32 %v330, 0.0
        %vm332 = vcmp.eq.f32.partialorder %v287, 11.0
        %v333 = vsel %vm332, 1, 0
        %v334 = vcvt.s32.f32 %v333
        %v335 = vadd.f32 %v334, 0.0
        %vm336 = vcmp.eq.f32.partialorder %v287, 12.0
        %v337 = vsel %vm336, 1, 0
        %v338 = vcvt.s32.f32 %v337
        %v339 = vadd.f32 %v338, 0.0
        %vm340 = vcmp.eq.f32.partialorder %v287, 13.0
        %v341 = vsel %vm340, 1, 0
        %v342 = vcvt.s32.f32 %v341
        %v343 = vadd.f32 %v342, 0.0
        %vm344 = vcmp.eq.f32.partialorder %v287, 14.0
        %v345 = vsel %vm344, 1, 0
        %v346 = vcvt.s32.f32 %v345
        %v347 = vadd.f32 %v346, 0.0
        %vm348 = vcmp.eq.f32.partialorder %v287, 15.0
        %v349 = vsel %vm348, 1, 0
        %v350 = vcvt.s32.f32 %v349
        %v351 = vadd.f32 %v350, 0.0
        %s352 = smul.u32 %s27, 16
        %s353 = smul.u32 %s352, 8
        %s354 = scalar_lea.vmem [#allocation2], %s353
        %v355 = vld [vmem:[%s354] sm:$0xff]
        %v356 = vadd.f32 %v355, %v291
        %357 = vst [vmem:[%s354] sm:$0xff] %v356
        %s358 = sadd.s32 %s352, 1
        %s359 = smul.u32 %s358, 8
        %s360 = scalar_lea.vmem [#allocation2], %s359
        %v361 = vld [vmem:[%s360] sm:$0xff]
        %v362 = vadd.f32 %v361, %v295
        %363 = vst [vmem:[%s360] sm:$0xff] %v362
        %s364 = sadd.s32 %s352, 2
        %s365 = smul.u32 %s364, 8
        %s366 = scalar_lea.vmem [#allocation2], %s365
        %v367 = vld [vmem:[%s366] sm:$0xff]
        %v368 = vadd.f32 %v367, %v299
        %369 = vst [vmem:[%s366] sm:$0xff] %v368
        %s370 = sadd.s32 %s352, 3
        %s371 = smul.u32 %s370, 8
        %s372 = scalar_lea.vmem [#allocation2], %s371
        %v373 = vld [vmem:[%s372] sm:$0xff]
        %v374 = vadd.f32 %v373, %v303
        %375 = vst [vmem:[%s372] sm:$0xff] %v374
        %s376 = sadd.s32 %s352, 4
        %s377 = smul.u32 %s376, 8
        %s378 = scalar_lea.vmem [#allocation2], %s377
        %v379 = vld [vmem:[%s378] sm:$0xff]
        %v380 = vadd.f32 %v379, %v307
        %381 = vst [vmem:[%s378] sm:$0xff] %v380
        %s382 = sadd.s32 %s352, 5
        %s383 = smul.u32 %s382, 8
        %s384 = scalar_lea.vmem [#allocation2], %s383
        %v385 = vld [vmem:[%s384] sm:$0xff]
        %v386 = vadd.f32 %v385, %v311
        %387 = vst [vmem:[%s384] sm:$0xff] %v386
        %s388 = sadd.s32 %s352, 6
        %s389 = smul.u32 %s388, 8
        %s390 = scalar_lea.vmem [#allocation2], %s389
        %v391 = vld [vmem:[%s390] sm:$0xff]
        %v392 = vadd.f32 %v391, %v315
        %393 = vst [vmem:[%s390] sm:$0xff] %v392
        %s394 = sadd.s32 %s352, 7
        %s395 = smul.u32 %s394, 8
        %s396 = scalar_lea.vmem [#allocation2], %s395
        %v397 = vld [vmem:[%s396] sm:$0xff]
        %v398 = vadd.f32 %v397, %v319
        %399 = vst [vmem:[%s396] sm:$0xff] %v398
        %s400 = sadd.s32 %s352, 8
        %s401 = smul.u32 %s400, 8
        %s402 = scalar_lea.vmem [#allocation2], %s401
        %v403 = vld [vmem:[%s402] sm:$0xff]
        %v404 = vadd.f32 %v403, %v323
        %405 = vst [vmem:[%s402] sm:$0xff] %v404
        %s406 = sadd.s32 %s352, 9
        %s407 = smul.u32 %s406, 8
        %s408 = scalar_lea.vmem [#allocation2], %s407
        %v409 = vld [vmem:[%s408] sm:$0xff]
        %v410 = vadd.f32 %v409, %v327
        %411 = vst [vmem:[%s408] sm:$0xff] %v410
        %s412 = sadd.s32 %s352, 10
        %s413 = smul.u32 %s412, 8
        %s414 = scalar_lea.vmem [#allocation2], %s413
        %v415 = vld [vmem:[%s414] sm:$0xff]
        %v416 = vadd.f32 %v415, %v331
        %417 = vst [vmem:[%s414] sm:$0xff] %v416
        %s418 = sadd.s32 %s352, 11
        %s419 = smul.u32 %s418, 8
        %s420 = scalar_lea.vmem [#allocation2], %s419
        %v421 = vld [vmem:[%s420] sm:$0xff]
        %v422 = vadd.f32 %v421, %v335
        %423 = vst [vmem:[%s420] sm:$0xff] %v422
        %s424 = sadd.s32 %s352, 12
        %s425 = smul.u32 %s424, 8
        %s426 = scalar_lea.vmem [#allocation2], %s425
        %v427 = vld [vmem:[%s426] sm:$0xff]
        %v428 = vadd.f32 %v427, %v339
        %429 = vst [vmem:[%s426] sm:$0xff] %v428
        %s430 = sadd.s32 %s352, 13
        %s431 = smul.u32 %s430, 8
        %s432 = scalar_lea.vmem [#allocation2], %s431
        %v433 = vld [vmem:[%s432] sm:$0xff]
        %v434 = vadd.f32 %v433, %v343
        %435 = vst [vmem:[%s432] sm:$0xff] %v434
        %s436 = sadd.s32 %s352, 14
        %s437 = smul.u32 %s436, 8
        %s438 = scalar_lea.vmem [#allocation2], %s437
        %v439 = vld [vmem:[%s438] sm:$0xff]
        %v440 = vadd.f32 %v439, %v347
        %441 = vst [vmem:[%s438] sm:$0xff] %v440
        %s442 = sadd.s32 %s352, 15
        %s443 = smul.u32 %s442, 8
        %s444 = scalar_lea.vmem [#allocation2], %s443
        %v445 = vld [vmem:[%s444] sm:$0xff]
        %v446 = vadd.f32 %v445, %v351
        %447 = vst [vmem:[%s444] sm:$0xff] %v446
        %p448 = scmp.eq.s32.totalorder %s27, 2
        %p449 = pnand %p448, %p227
        %p450 = pneg %p449
        // Predicated region
        $region45: #{tpu_custom_call.1} parent=31 // pred_check
          _
        $region46: #{tpu_custom_call.1} parent=31 // pred_check_branch
          %452 = sbr.rel (%p449) target = $region48
        $region47: #{tpu_custom_call.1} parent=31 // pred_region
          %v453 = vld [vmem:[#allocation2] sm:$0xff]
          %v454 = vld [vmem:[#allocation2 + $0x8] sm:$0xff]
          %v455 = vld [vmem:[#allocation2 + $0x10] sm:$0xff]
          %v456 = vld [vmem:[#allocation2 + $0x18] sm:$0xff]
          %v457 = vld [vmem:[#allocation2 + $0x20] sm:$0xff]
          %v458 = vld [vmem:[#allocation2 + $0x28] sm:$0xff]
          %v459 = vld [vmem:[#allocation2 + $0x30] sm:$0xff]
          %v460 = vld [vmem:[#allocation2 + $0x38] sm:$0xff]
          %v461 = vld [vmem:[#allocation2 + $0x40] sm:$0xff]
          %v462 = vld [vmem:[#allocation2 + $0x48] sm:$0xff]
          %v463 = vld [vmem:[#allocation2 + $0x50] sm:$0xff]
          %v464 = vld [vmem:[#allocation2 + $0x58] sm:$0xff]
          %v465 = vld [vmem:[#allocation2 + $0x60] sm:$0xff]
          %v466 = vld [vmem:[#allocation2 + $0x68] sm:$0xff]
          %v467 = vld [vmem:[#allocation2 + $0x70] sm:$0xff]
          %v468 = vld [vmem:[#allocation2 + $0x78] sm:$0xff]
          %v469 = vld [vmem:[#allocation2 + $0x80] sm:$0xff]
          %v470 = vld [vmem:[#allocation2 + $0x88] sm:$0xff]
          %v471 = vld [vmem:[#allocation2 + $0x90] sm:$0xff]
          %v472 = vld [vmem:[#allocation2 + $0x98] sm:$0xff]
          %v473 = vld [vmem:[#allocation2 + $0xa0] sm:$0xff]
          %v474 = vld [vmem:[#allocation2 + $0xa8] sm:$0xff]
          %v475 = vld [vmem:[#allocation2 + $0xb0] sm:$0xff]
          %v476 = vld [vmem:[#allocation2 + $0xb8] sm:$0xff]
          %v477 = vld [vmem:[#allocation2 + $0xc0] sm:$0xff]
          %v478 = vld [vmem:[#allocation2 + $0xc8] sm:$0xff]
          %v479 = vld [vmem:[#allocation2 + $0xd0] sm:$0xff]
          %v480 = vld [vmem:[#allocation2 + $0xd8] sm:$0xff]
          %v481 = vld [vmem:[#allocation2 + $0xe0] sm:$0xff]
          %v482 = vld [vmem:[#allocation2 + $0xe8] sm:$0xff]
          %v483 = vld [vmem:[#allocation2 + $0xf0] sm:$0xff]
          %v484 = vld [vmem:[#allocation2 + $0xf8] sm:$0xff]
          %v485 = vld [vmem:[#allocation2 + $0x100] sm:$0xff]
          %v486 = vld [vmem:[#allocation2 + $0x108] sm:$0xff]
          %v487 = vld [vmem:[#allocation2 + $0x110] sm:$0xff]
          %v488 = vld [vmem:[#allocation2 + $0x118] sm:$0xff]
          %v489 = vld [vmem:[#allocation2 + $0x120] sm:$0xff]
          %v490 = vld [vmem:[#allocation2 + $0x128] sm:$0xff]
          %v491 = vld [vmem:[#allocation2 + $0x130] sm:$0xff]
          %v492 = vld [vmem:[#allocation2 + $0x138] sm:$0xff]
          %v493 = vld [vmem:[#allocation2 + $0x140] sm:$0xff]
          %v494 = vld [vmem:[#allocation2 + $0x148] sm:$0xff]
          %v495 = vld [vmem:[#allocation2 + $0x150] sm:$0xff]
          %v496 = vld [vmem:[#allocation2 + $0x158] sm:$0xff]
          %v497 = vld [vmem:[#allocation2 + $0x160] sm:$0xff]
          %v498 = vld [vmem:[#allocation2 + $0x168] sm:$0xff]
          %v499 = vld [vmem:[#allocation2 + $0x170] sm:$0xff]
          %v500 = vld [vmem:[#allocation2 + $0x178] sm:$0xff]
          %501 = vadd.xlane.f32.xlu0 %v453
          %v502 = vpop.xlane.xlu0 %501
          %503 = vadd.xlane.f32.xlu0 %v454
          %v504 = vpop.xlane.xlu0 %503
          %505 = vadd.xlane.f32.xlu0 %v455
          %v506 = vpop.xlane.xlu0 %505
          %507 = vadd.xlane.f32.xlu0 %v456
          %v508 = vpop.xlane.xlu0 %507
          %509 = vadd.xlane.f32.xlu0 %v457
          %v510 = vpop.xlane.xlu0 %509
          %511 = vadd.xlane.f32.xlu0 %v458
          %v512 = vpop.xlane.xlu0 %511
          %513 = vadd.xlane.f32.xlu0 %v459
          %v514 = vpop.xlane.xlu0 %513
          %515 = vadd.xlane.f32.xlu0 %v460
          %v516 = vpop.xlane.xlu0 %515
          %517 = vadd.xlane.f32.xlu0 %v461
          %v518 = vpop.xlane.xlu0 %517
          %519 = vadd.xlane.f32.xlu0 %v462
          %v520 = vpop.xlane.xlu0 %519
          %521 = vadd.xlane.f32.xlu0 %v463
          %v522 = vpop.xlane.xlu0 %521
          %523 = vadd.xlane.f32.xlu0 %v464
          %v524 = vpop.xlane.xlu0 %523
          %525 = vadd.xlane.f32.xlu0 %v465
          %v526 = vpop.xlane.xlu0 %525
          %527 = vadd.xlane.f32.xlu0 %v466
          %v528 = vpop.xlane.xlu0 %527
          %529 = vadd.xlane.f32.xlu0 %v467
          %v530 = vpop.xlane.xlu0 %529
          %531 = vadd.xlane.f32.xlu0 %v468
          %v532 = vpop.xlane.xlu0 %531
          %533 = vadd.xlane.f32.xlu0 %v469
          %v534 = vpop.xlane.xlu0 %533
          %535 = vadd.xlane.f32.xlu0 %v470
          %v536 = vpop.xlane.xlu0 %535
          %537 = vadd.xlane.f32.xlu0 %v471
          %v538 = vpop.xlane.xlu0 %537
          %539 = vadd.xlane.f32.xlu0 %v472
          %v540 = vpop.xlane.xlu0 %539
          %541 = vadd.xlane.f32.xlu0 %v473
          %v542 = vpop.xlane.xlu0 %541
          %543 = vadd.xlane.f32.xlu0 %v474
          %v544 = vpop.xlane.xlu0 %543
          %545 = vadd.xlane.f32.xlu0 %v475
          %v546 = vpop.xlane.xlu0 %545
          %547 = vadd.xlane.f32.xlu0 %v476
          %v548 = vpop.xlane.xlu0 %547
          %549 = vadd.xlane.f32.xlu0 %v477
          %v550 = vpop.xlane.xlu0 %549
          %551 = vadd.xlane.f32.xlu0 %v478
          %v552 = vpop.xlane.xlu0 %551
          %553 = vadd.xlane.f32.xlu0 %v479
          %v554 = vpop.xlane.xlu0 %553
          %555 = vadd.xlane.f32.xlu0 %v480
          %v556 = vpop.xlane.xlu0 %555
          %557 = vadd.xlane.f32.xlu0 %v481
          %v558 = vpop.xlane.xlu0 %557
          %559 = vadd.xlane.f32.xlu0 %v482
          %v560 = vpop.xlane.xlu0 %559
          %561 = vadd.xlane.f32.xlu0 %v483
          %v562 = vpop.xlane.xlu0 %561
          %563 = vadd.xlane.f32.xlu0 %v484
          %v564 = vpop.xlane.xlu0 %563
          %565 = vadd.xlane.f32.xlu0 %v485
          %v566 = vpop.xlane.xlu0 %565
          %567 = vadd.xlane.f32.xlu0 %v486
          %v568 = vpop.xlane.xlu0 %567
          %569 = vadd.xlane.f32.xlu0 %v487
          %v570 = vpop.xlane.xlu0 %569
          %571 = vadd.xlane.f32.xlu0 %v488
          %v572 = vpop.xlane.xlu0 %571
          %573 = vadd.xlane.f32.xlu0 %v489
          %v574 = vpop.xlane.xlu0 %573
          %575 = vadd.xlane.f32.xlu0 %v490
          %v576 = vpop.xlane.xlu0 %575
          %577 = vadd.xlane.f32.xlu0 %v491
          %v578 = vpop.xlane.xlu0 %577
          %579 = vadd.xlane.f32.xlu0 %v492
          %v580 = vpop.xlane.xlu0 %579
          %581 = vadd.xlane.f32.xlu0 %v493
          %v582 = vpop.xlane.xlu0 %581
          %583 = vadd.xlane.f32.xlu0 %v494
          %v584 = vpop.xlane.xlu0 %583
          %585 = vadd.xlane.f32.xlu0 %v495
          %v586 = vpop.xlane.xlu0 %585
          %587 = vadd.xlane.f32.xlu0 %v496
          %v588 = vpop.xlane.xlu0 %587
          %589 = vadd.xlane.f32.xlu0 %v497
          %v590 = vpop.xlane.xlu0 %589
          %591 = vadd.xlane.f32.xlu0 %v498
          %v592 = vpop.xlane.xlu0 %591
          %593 = vadd.xlane.f32.xlu0 %v499
          %v594 = vpop.xlane.xlu0 %593
          %595 = vadd.xlane.f32.xlu0 %v500
          %v596 = vpop.xlane.xlu0 %595
          %v645 = vlaneseq
          %v646 = vand.u32 %v645, 127
          %v647 = vlaneseq
          %v648 = vshrl.u32 %v647, 7
          %v649 = vsub.s32 %v646, %v648
          %v650 = vrot.slane %v502, %v649
          %v651 = vlaneseq
          %v652 = vshrl.u32 %v651, 7
          %v653 = vsub.s32 %v646, %v652
          %v654 = vrot.slane %v504, %v653
          %v655 = vlaneseq
          %v656 = vshrl.u32 %v655, 7
          %v657 = vsub.s32 %v646, %v656
          %v658 = vrot.slane %v506, %v657
          %v659 = vlaneseq
          %v660 = vshrl.u32 %v659, 7
          %v661 = vsub.s32 %v646, %v660
          %v662 = vrot.slane %v508, %v661
          %v663 = vlaneseq
          %v664 = vshrl.u32 %v663, 7
          %v665 = vsub.s32 %v646, %v664
          %v666 = vrot.slane %v510, %v665
          %v667 = vlaneseq
          %v668 = vshrl.u32 %v667, 7
          %v669 = vsub.s32 %v646, %v668
          %v670 = vrot.slane %v512, %v669
          %v671 = vlaneseq
          %v672 = vshrl.u32 %v671, 7
          %v673 = vsub.s32 %v646, %v672
          %v674 = vrot.slane %v514, %v673
          %v675 = vlaneseq
          %v676 = vshrl.u32 %v675, 7
          %v677 = vsub.s32 %v646, %v676
          %v678 = vrot.slane %v516, %v677
          %v679 = vlaneseq
          %v680 = vshrl.u32 %v679, 7
          %v681 = vsub.s32 %v646, %v680
          %v682 = vrot.slane %v518, %v681
          %v683 = vlaneseq
          %v684 = vshrl.u32 %v683, 7
          %v685 = vsub.s32 %v646, %v684
          %v686 = vrot.slane %v520, %v685
          %v687 = vlaneseq
          %v688 = vshrl.u32 %v687, 7
          %v689 = vsub.s32 %v646, %v688
          %v690 = vrot.slane %v522, %v689
          %v691 = vlaneseq
          %v692 = vshrl.u32 %v691, 7
          %v693 = vsub.s32 %v646, %v692
          %v694 = vrot.slane %v524, %v693
          %v695 = vlaneseq
          %v696 = vshrl.u32 %v695, 7
          %v697 = vsub.s32 %v646, %v696
          %v698 = vrot.slane %v526, %v697
          %v699 = vlaneseq
          %v700 = vshrl.u32 %v699, 7
          %v701 = vsub.s32 %v646, %v700
          %v702 = vrot.slane %v528, %v701
          %v703 = vlaneseq
          %v704 = vshrl.u32 %v703, 7
          %v705 = vsub.s32 %v646, %v704
          %v706 = vrot.slane %v530, %v705
          %v707 = vlaneseq
          %v708 = vshrl.u32 %v707, 7
          %v709 = vsub.s32 %v646, %v708
          %v710 = vrot.slane %v532, %v709
          %v711 = vlaneseq
          %v712 = vshrl.u32 %v711, 7
          %v713 = vsub.s32 %v646, %v712
          %v714 = vrot.slane %v534, %v713
          %v715 = vlaneseq
          %v716 = vshrl.u32 %v715, 7
          %v717 = vsub.s32 %v646, %v716
          %v718 = vrot.slane %v536, %v717
          %v719 = vlaneseq
          %v720 = vshrl.u32 %v719, 7
          %v721 = vsub.s32 %v646, %v720
          %v722 = vrot.slane %v538, %v721
          %v723 = vlaneseq
          %v724 = vshrl.u32 %v723, 7
          %v725 = vsub.s32 %v646, %v724
          %v726 = vrot.slane %v540, %v725
          %v727 = vlaneseq
          %v728 = vshrl.u32 %v727, 7
          %v729 = vsub.s32 %v646, %v728
          %v730 = vrot.slane %v542, %v729
          %v731 = vlaneseq
          %v732 = vshrl.u32 %v731, 7
          %v733 = vsub.s32 %v646, %v732
          %v734 = vrot.slane %v544, %v733
          %v735 = vlaneseq
          %v736 = vshrl.u32 %v735, 7
          %v737 = vsub.s32 %v646, %v736
          %v738 = vrot.slane %v546, %v737
          %v739 = vlaneseq
          %v740 = vshrl.u32 %v739, 7
          %v741 = vsub.s32 %v646, %v740
          %v742 = vrot.slane %v548, %v741
          %v743 = vlaneseq
          %v744 = vshrl.u32 %v743, 7
          %v745 = vsub.s32 %v646, %v744
          %v746 = vrot.slane %v550, %v745
          %v747 = vlaneseq
          %v748 = vshrl.u32 %v747, 7
          %v749 = vsub.s32 %v646, %v748
          %v750 = vrot.slane %v552, %v749
          %v751 = vlaneseq
          %v752 = vshrl.u32 %v751, 7
          %v753 = vsub.s32 %v646, %v752
          %v754 = vrot.slane %v554, %v753
          %v755 = vlaneseq
          %v756 = vshrl.u32 %v755, 7
          %v757 = vsub.s32 %v646, %v756
          %v758 = vrot.slane %v556, %v757
          %v759 = vlaneseq
          %v760 = vshrl.u32 %v759, 7
          %v761 = vsub.s32 %v646, %v760
          %v762 = vrot.slane %v558, %v761
          %v763 = vlaneseq
          %v764 = vshrl.u32 %v763, 7
          %v765 = vsub.s32 %v646, %v764
          %v766 = vrot.slane %v560, %v765
          %v767 = vlaneseq
          %v768 = vshrl.u32 %v767, 7
          %v769 = vsub.s32 %v646, %v768
          %v770 = vrot.slane %v562, %v769
          %v771 = vlaneseq
          %v772 = vshrl.u32 %v771, 7
          %v773 = vsub.s32 %v646, %v772
          %v774 = vrot.slane %v564, %v773
          %v775 = vlaneseq
          %v776 = vshrl.u32 %v775, 7
          %v777 = vsub.s32 %v646, %v776
          %v778 = vrot.slane %v566, %v777
          %v779 = vlaneseq
          %v780 = vshrl.u32 %v779, 7
          %v781 = vsub.s32 %v646, %v780
          %v782 = vrot.slane %v568, %v781
          %v783 = vlaneseq
          %v784 = vshrl.u32 %v783, 7
          %v785 = vsub.s32 %v646, %v784
          %v786 = vrot.slane %v570, %v785
          %v787 = vlaneseq
          %v788 = vshrl.u32 %v787, 7
          %v789 = vsub.s32 %v646, %v788
          %v790 = vrot.slane %v572, %v789
          %v791 = vlaneseq
          %v792 = vshrl.u32 %v791, 7
          %v793 = vsub.s32 %v646, %v792
          %v794 = vrot.slane %v574, %v793
          %v795 = vlaneseq
          %v796 = vshrl.u32 %v795, 7
          %v797 = vsub.s32 %v646, %v796
          %v798 = vrot.slane %v576, %v797
          %v799 = vlaneseq
          %v800 = vshrl.u32 %v799, 7
          %v801 = vsub.s32 %v646, %v800
          %v802 = vrot.slane %v578, %v801
          %v803 = vlaneseq
          %v804 = vshrl.u32 %v803, 7
          %v805 = vsub.s32 %v646, %v804
          %v806 = vrot.slane %v580, %v805
          %v807 = vlaneseq
          %v808 = vshrl.u32 %v807, 7
          %v809 = vsub.s32 %v646, %v808
          %v810 = vrot.slane %v582, %v809
          %v811 = vlaneseq
          %v812 = vshrl.u32 %v811, 7
          %v813 = vsub.s32 %v646, %v812
          %v814 = vrot.slane %v584, %v813
          %v815 = vlaneseq
          %v816 = vshrl.u32 %v815, 7
          %v817 = vsub.s32 %v646, %v816
          %v818 = vrot.slane %v586, %v817
          %v819 = vlaneseq
          %v820 = vshrl.u32 %v819, 7
          %v821 = vsub.s32 %v646, %v820
          %v822 = vrot.slane %v588, %v821
          %v823 = vlaneseq
          %v824 = vshrl.u32 %v823, 7
          %v825 = vsub.s32 %v646, %v824
          %v826 = vrot.slane %v590, %v825
          %v827 = vlaneseq
          %v828 = vshrl.u32 %v827, 7
          %v829 = vsub.s32 %v646, %v828
          %v830 = vrot.slane %v592, %v829
          %v831 = vlaneseq
          %v832 = vshrl.u32 %v831, 7
          %v833 = vsub.s32 %v646, %v832
          %v834 = vrot.slane %v594, %v833
          %v835 = vlaneseq
          %v836 = vshrl.u32 %v835, 7
          %v837 = vsub.s32 %v646, %v836
          %v838 = vrot.slane %v596, %v837
          %vm839 = vcmask 1041409
          %v840 = vsel %vm839, %v654, %v650
          %vm841 = vcmask 1042434
          %v842 = vsel %vm841, %v658, %v840
          %vm843 = vcmask 1043459
          %v844 = vsel %vm843, %v662, %v842
          %vm845 = vcmask 1044484
          %v846 = vsel %vm845, %v666, %v844
          %vm847 = vcmask 1045509
          %v848 = vsel %vm847, %v670, %v846
          %vm849 = vcmask 1046534
          %v850 = vsel %vm849, %v674, %v848
          %vm851 = vcmask 1047559
          %v852 = vsel %vm851, %v678, %v850
          %v853 = vsel %vm839, %v686, %v682
          %v854 = vsel %vm841, %v690, %v853
          %v855 = vsel %vm843, %v694, %v854
          %v856 = vsel %vm845, %v698, %v855
          %v857 = vsel %vm847, %v702, %v856
          %v858 = vsel %vm849, %v706, %v857
          %v859 = vsel %vm851, %v710, %v858
          %v860 = vsel %vm839, %v718, %v714
          %v861 = vsel %vm841, %v722, %v860
          %v862 = vsel %vm843, %v726, %v861
          %v863 = vsel %vm845, %v730, %v862
          %v864 = vsel %vm847, %v734, %v863
          %v865 = vsel %vm849, %v738, %v864
          %v866 = vsel %vm851, %v742, %v865
          %v867 = vsel %vm839, %v750, %v746
          %v868 = vsel %vm841, %v754, %v867
          %v869 = vsel %vm843, %v758, %v868
          %v870 = vsel %vm845, %v762, %v869
          %v871 = vsel %vm847, %v766, %v870
          %v872 = vsel %vm849, %v770, %v871
          %v873 = vsel %vm851, %v774, %v872
          %v874 = vsel %vm839, %v782, %v778
          %v875 = vsel %vm841, %v786, %v874
          %v876 = vsel %vm843, %v790, %v875
          %v877 = vsel %vm845, %v794, %v876
          %v878 = vsel %vm847, %v798, %v877
          %v879 = vsel %vm849, %v802, %v878
          %v880 = vsel %vm851, %v806, %v879
          %v881 = vsel %vm839, %v814, %v810
          %v882 = vsel %vm841, %v818, %v881
          %v883 = vsel %vm843, %v822, %v882
          %v884 = vsel %vm845, %v826, %v883
          %v885 = vsel %vm847, %v830, %v884
          %v886 = vsel %vm849, %v834, %v885
          %v887 = vsel %vm851, %v838, %v886
          %vm894 = vcmask 64512
          %v895 = vsel %vm894, %v852, 0.0
          %896 = vadd.xlane.f32.xlu0 %v895
          %v897 = vpop.xlane.xlu0 %896
          %v898 = vsel %vm894, %v859, 0.0
          %899 = vadd.xlane.f32.xlu0 %v898
          %v900 = vpop.xlane.xlu0 %899
          %v901 = vsel %vm894, %v866, 0.0
          %902 = vadd.xlane.f32.xlu0 %v901
          %v903 = vpop.xlane.xlu0 %902
          %v904 = vsel %vm894, %v873, 0.0
          %905 = vadd.xlane.f32.xlu0 %v904
          %v906 = vpop.xlane.xlu0 %905
          %v907 = vsel %vm894, %v880, 0.0
          %908 = vadd.xlane.f32.xlu0 %v907
          %v909 = vpop.xlane.xlu0 %908
          %v910 = vsel %vm894, %v887, 0.0
          %911 = vadd.xlane.f32.xlu0 %v910
          %v912 = vpop.xlane.xlu0 %911
          %v913 = vld [vmem:[#allocation6] sm:$0xff]
          %v914 = vld [vmem:[#allocation6 + $0x8] sm:$0xff]
          %v915 = vld [vmem:[#allocation6 + $0x10] sm:$0xff]
          %v916 = vld [vmem:[#allocation6 + $0x18] sm:$0xff]
          %v917 = vld [vmem:[#allocation6 + $0x20] sm:$0xff]
          %v918 = vld [vmem:[#allocation6 + $0x28] sm:$0xff]
          %v919 = vld [vmem:[%s2] sm:$0x1]
          %v926 = vlaneseq
          %v927 = vshrl.u32 %v926, 7
          %v928 = vsub.s32 %v646, %v927
          %v929 = vrot.slane %v897, %v928
          %v930 = vadd.s32 %v646, 4294967288
          %v931 = vlaneseq
          %v932 = vshrl.u32 %v931, 7
          %v933 = vsub.s32 %v930, %v932
          %v934 = vrot.slane %v900, %v933
          %vm935 = vcmask 130112
          %v936 = vsel %vm935, %v934, %v929
          %v937 = vadd.s32 %v646, 4294967280
          %v938 = vlaneseq
          %v939 = vshrl.u32 %v938, 7
          %v940 = vsub.s32 %v937, %v939
          %v941 = vrot.slane %v903, %v940
          %vm942 = vcmask 195712
          %v943 = vsel %vm942, %v941, %v936
          %v944 = vadd.s32 %v646, 4294967272
          %v945 = vlaneseq
          %v946 = vshrl.u32 %v945, 7
          %v947 = vsub.s32 %v944, %v946
          %v948 = vrot.slane %v906, %v947
          %vm949 = vcmask 261312
          %v950 = vsel %vm949, %v948, %v943
          %v951 = vadd.s32 %v646, 4294967264
          %v952 = vlaneseq
          %v953 = vshrl.u32 %v952, 7
          %v954 = vsub.s32 %v951, %v953
          %v955 = vrot.slane %v909, %v954
          %vm956 = vcmask 326912
          %v957 = vsel %vm956, %v955, %v950
          %v958 = vadd.s32 %v646, 4294967256
          %v959 = vlaneseq
          %v960 = vshrl.u32 %v959, 7
          %v961 = vsub.s32 %v958, %v960
          %v962 = vrot.slane %v912, %v961
          %vm963 = vcmask 392512
          %v964 = vsel %vm963, %v962, %v957
          %vm965 = vcmask 392192
          %v966 = vsel %vm965, %v964, 0
          %968 = vmatprep.subr.mxu0 0.0
          %969 = vmatpush1.msra.mxu0 %v913
          %970 = vmatprep.subr.mxu0 0.0
          %971 = vmatpush1.msra.mxu0 %v914
          %972 = vmatprep.subr.mxu0 0.0
          %973 = vmatpush1.msra.mxu0 %v915
          %974 = vmatprep.subr.mxu0 0.0
          %975 = vmatpush1.msra.mxu0 %v916
          %976 = vmatprep.subr.mxu0 0.0
          %977 = vmatpush1.msra.mxu0 %v917
          %978 = vmatprep.subr.mxu0 0.0
          %979 = vmatpush1.msra.mxu0 %v918
          %980 = vmatprep.subr.mxu0 0.0
          %981 = vmatpush1.msra.mxu0 0.0
          %982 = vmatprep.subr.mxu0 0.0
          %983 = vmatpush1.msra.mxu0 0.0
          %984 = vmatprep.subr.mxu0 0.0
          %985 = vmatpush1.msra.mxu0 0.0
          %986 = vmatprep.subr.mxu0 0.0
          %987 = vmatpush1.msra.mxu0 0.0
          %988 = vmatprep.subr.mxu0 0.0
          %989 = vmatpush1.msra.mxu0 0.0
          %990 = vmatprep.subr.mxu0 0.0
          %991 = vmatpush1.msra.mxu0 0.0
          %992 = vmatprep.subr.mxu0 0.0
          %993 = vmatpush1.msra.mxu0 0.0
          %994 = vmatprep.subr.mxu0 0.0
          %995 = vmatpush1.msra.mxu0 0.0
          %996 = vmatprep.subr.mxu0 0.0
          %997 = vmatpush1.msra.mxu0 0.0
          %998 = vmatprep.subr.mxu0 0.0
          %999 = vmatpush1.msra.mxu0 0.0
          %1000 = vmatprep.subr.mxu0 0.0
          %1001 = vmatpush1.msra.mxu0 0.0
          %1002 = vmatprep.subr.mxu0 0.0
          %1003 = vmatpush1.msra.mxu0 0.0
          %1004 = vmatprep.subr.mxu0 0.0
          %1005 = vmatpush1.msra.mxu0 0.0
          %1006 = vmatprep.subr.mxu0 0.0
          %1007 = vmatpush1.msra.mxu0 0.0
          %1008 = vmatprep.subr.mxu0 0.0
          %1009 = vmatpush1.msra.mxu0 0.0
          %1010 = vmatprep.subr.mxu0 0.0
          %1011 = vmatpush1.msra.mxu0 0.0
          %1012 = vmatprep.subr.mxu0 0.0
          %1013 = vmatpush1.msra.mxu0 0.0
          %1014 = vmatprep.subr.mxu0 0.0
          %1015 = vmatpush1.msra.mxu0 0.0
          %1016 = vmatprep.subr.mxu0 0.0
          %1017 = vmatpush1.msra.mxu0 0.0
          %1018 = vmatprep.subr.mxu0 0.0
          %1019 = vmatpush1.msra.mxu0 0.0
          %1020 = vmatprep.subr.mxu0 0.0
          %1021 = vmatpush1.msra.mxu0 0.0
          %1022 = vmatprep.subr.mxu0 0.0
          %1023 = vmatpush1.msra.mxu0 0.0
          %1024 = vmatprep.subr.mxu0 0.0
          %1025 = vmatpush1.msra.mxu0 0.0
          %1026 = vmatprep.subr.mxu0 0.0
          %1027 = vmatpush1.msra.mxu0 0.0
          %1028 = vmatprep.subr.mxu0 0.0
          %1029 = vmatpush1.msra.mxu0 0.0
          %1030 = vmatprep.subr.mxu0 0.0
          %1031 = vmatpush1.msra.mxu0 0.0
          %1032 = vmatprep.mubr.f32.mxu0 0.0
          %1033 = vmatmul.mubr.f32.gmra.mrb[0].mxu0 %v966
          %v1034 = vpop.f32.mrb[0].mxu0
          %v1035 = vadd.f32 %v919, %v1034
          %v1036 = vpop.f32.mrb[0].mxu0
          %1037 = vdwg.mxu0
          %v1038 = vmax.f32 %v1035, 0.0
          %vm1039 = vcmask 516096
          %1040 = vst.msk [vmem:[%s225] sm:$0x1] %vm1039, %v1038
        $region48: #{tpu_custom_call.1} parent=31 // pred_fallthru
          _
        %s1041 = sand.u32 %s120, 1
        %s1042 = scalar_lea.sflag [#allocation5], %s1041
        %s1043 = sand.u32 %s120, 1
        %s1044 = scalar_lea.vmem [#allocation8], %s1043
        // Predicated region
        $region49: #{tpu_custom_call.1} parent=31 // pred_check
          %p1045 = pneg %p130
        $region50: #{tpu_custom_call.1} parent=31 // pred_check_branch
          %1047 = sbr.rel (%p1045) target = $region52
        $region51: #{tpu_custom_call.1} parent=31 // pred_region
          %s1049 = ssub.s32 16, 16
          %1050 = vsyncadd %s1042, %s1049
          %s1051 = smul.addr %s26, 16
          %s1052 = scalar_lea.hbm %s3, %s1051
          %s1054 = sshll.u32 %s1044, 4
          %s1055 = int_to_ptr.vmem [resolvable:$true] %s1054
          %1057 = dma.vmem_to_hbm [thread:$0]  %s1055, 16, %s1052, %s1042
        $region52: #{tpu_custom_call.1} parent=31 // pred_fallthru
          _
      $region32: #{tpu_custom_call.1} parent=5 // pred_fallthru
        _
      %p1058 = scmp.le.s32.totalorder 2, %s16
      // Predicated region
      $region53: #{tpu_custom_call.1} parent=5 // pred_check
        %p1059 = pneg %p1058
      $region54: #{tpu_custom_call.1} parent=5 // pred_check_branch
        %1061 = sbr.rel (%p1059) target = $region56
      $region55: #{tpu_custom_call.1} parent=5 // pred_region
        %s1062 = ssub.s32 %s16, 2
        // Predicated region
        $region57: #{tpu_custom_call.1} parent=55 // pred_check
          %p1063 = pneg %p136
        $region58: #{tpu_custom_call.1} parent=55 // pred_check_branch
          %1065 = sbr.rel (%p1063) target = $region60
        $region59: #{tpu_custom_call.1} parent=55 // pred_region
          %s1066 = sand.u32 %s121, 1
          %s1067 = scalar_lea.sflag [#allocation5], %s1066
          %s1068 = sand.u32 %s121, 1
          %s1069 = scalar_lea.vmem [#allocation8], %s1068
          %1070 = dma.done %s1067, 16
        $region60: #{tpu_custom_call.1} parent=55 // pred_fallthru
          _
      $region56: #{tpu_custom_call.1} parent=5 // pred_fallthru
        _
    $region6: #{tpu_custom_call.1} parent=1 // loop_footer
      %s20 = sadd.s32 1, %s16
    $region7: #{tpu_custom_call.1} parent=1 // loop_footer_branch
      %15 = sbr.rel target = $region3
    $region8: #{tpu_custom_call.1} parent=1 // loop_exit
      _
    %1071 = vsyncpa [#allocation4], 1
    %s1072 = scalar_lea.sflag [#allocation4], 1
    %1073 = vsyncpa %s1072, 1
    %1074 = vsyncpa [#allocation7], 1
    %1075 = vsyncpa [#allocation5], 1
    %s1076 = scalar_lea.sflag [#allocation5], 1
    %1077 = vsyncpa %s1076, 1

</llo_original>
